<compile_context>
chip_gen: v6e
topology: v6e:2x2x1
jax: 0.10.0
libtpu: 0.0.40
codegen_flags: <defaults>
</compile_context>

<pallas_src>
import jax
import jax.numpy as jnp
from jax.experimental import pallas as pl
from jax.experimental.pallas import tpu as pltpu


def _residual_block_kernel(x_ref, m1_ref, m2_ref, s_ref, st_ref,
                           g1_ref, b1_ref, g2_ref, b2_ref,
                           out_ref, slab_ref):
    """All refs are VMEM-resident.

    x_ref    : (N, H, W*C)      f32 input rows, channels folded into lanes
    m*_ref   : (3*W*C, W*C)     bf16 stacked block-banded conv weights
    s_ref    : (W*C, C)         lane -> channel selector (f32)
    st_ref   : (C, W*C)         channel -> lane selector (f32)
    g*/b*    : (1, C)           BN gamma / beta (f32)
    out_ref  : (N, H, W*C)      f32
    slab_ref : (N, H, 3*W*C)    bf16 staging scratch: column block dy holds the
                                activation rows shifted by dy-1 (vertical halo
                                rows are zero).
    """
    N, H, WC = x_ref.shape
    C = g1_ref.shape[1]
    W = WC // C
    NH = N * H
    inv_count = jnp.float32(1.0 / (N * H * W))
    eps = jnp.float32(1e-5)

    # ---- zero ONLY the vertical halo rows, once (refills never touch them) ---
    zrow = jnp.zeros((N, 1, WC), jnp.bfloat16)
    slab_ref[:, 0:1, 0:WC] = zrow                    # dy=0 block, top halo
    slab_ref[:, H - 1:H, 2 * WC:3 * WC] = zrow       # dy=2 block, bottom halo

    def fill_slab(src_bf16):
        # src_bf16: (N, H, WC) bf16.  Lane-aligned column blocks (offsets are
        # multiples of 128 for the demo shape).
        slab_ref[:, 1:H, 0:WC] = src_bf16[:, 0:H - 1, :]        # rows y-1
        slab_ref[:, :, WC:2 * WC] = src_bf16                    # rows y
        slab_ref[:, 0:H - 1, 2 * WC:3 * WC] = src_bf16[:, 1:H, :]  # rows y+1

    def conv3x3(m_ref):
        # Single (NH, 3*WC) x (3*WC, WC) bf16 matmul, f32 accumulation.
        lhs = slab_ref[...].reshape(NH, 3 * WC)
        return jnp.dot(lhs, m_ref[...], preferred_element_type=jnp.float32)

    sel = s_ref[...]
    sel_t = st_ref[...]

    def batchnorm(acc, g_ref, b_ref):
        # fused single-pass batch stats: E[x^2] - E[x]^2, f32 accumulators.
        # Selector dots are batched (2 per BN instead of 4).
        lane_stats = jnp.concatenate(
            [jnp.sum(acc, axis=0, keepdims=True),
             jnp.sum(acc * acc, axis=0, keepdims=True)], axis=0)   # (2, WC)
        ch_stats = jnp.dot(lane_stats, sel,
                           preferred_element_type=jnp.float32)     # (2, C)
        mean = ch_stats[0:1, :] * inv_count                        # (1, C)
        var = ch_stats[1:2, :] * inv_count - mean * mean           # biased var
        scale_c = g_ref[...] * jax.lax.rsqrt(var + eps)            # (1, C)
        shift_c = b_ref[...] - mean * scale_c
        cs = jnp.concatenate([scale_c, shift_c], axis=0)           # (2, C)
        lane_cs = jnp.dot(cs, sel_t,
                          preferred_element_type=jnp.float32)      # (2, WC)
        return acc * lane_cs[0:1, :] + lane_cs[1:2, :]

    # ---- conv1 -> bn1 -> relu ------------------------------------------------
    fill_slab(x_ref[...].astype(jnp.bfloat16))
    h = jnp.maximum(batchnorm(conv3x3(m1_ref), g1_ref, b1_ref), 0.0)

    # ---- conv2 -> bn2 -> +residual -> relu ------------------------------------
    fill_slab(h.astype(jnp.bfloat16).reshape(N, H, WC))
    h2 = batchnorm(conv3x3(m2_ref), g2_ref, b2_ref)
    # residual read at the point of use (short f32 live range)
    out = jnp.maximum(h2 + x_ref[...].reshape(NH, WC), 0.0)
    out_ref[...] = out.reshape(N, H, WC).astype(out_ref.dtype)


def _banded_weights(w_oihw, W):
    """PyTorch (Cout, Cin, 3, 3) -> (3*W*Cin, W*Cout) bf16 stacked banded mats.

    Block dy of the output satisfies
      M[dy][(x+dx-1)*Cin + ci, x*Cout + co] = w[co, ci, dy, dx];
    terms whose input column x+dx-1 falls outside [0, W) are dropped, which
    implements the horizontal zero padding of the 'same' conv.  The three dy
    blocks are stacked vertically so one K=3*W*Cin matmul does the whole conv.
    """
    w_hwio = jnp.transpose(w_oihw, (2, 3, 1, 0)).astype(jnp.float32)
    mats = []
    for dy in range(3):
        m = None
        for dx in range(3):
            shift = jnp.eye(W, W, k=1 - dx, dtype=jnp.float32)
            term = jnp.kron(shift, w_hwio[dy, dx])
            m = term if m is None else m + term
        mats.append(m)
    return jnp.concatenate(mats, axis=0).astype(jnp.bfloat16)


@jax.jit
def residual_block_rows(x_rows, w1, w2, gamma1, beta1, gamma2, beta2):
    """Lane-dense entry point: x_rows is (N, H, W*C) f32, channels innermost.

    Returns the block output in the same (N, H, W*C) layout so stacked layers
    never pay the NCHW <-> lane-dense relayout.
    """
    N, H, WC = x_rows.shape
    C = gamma1.shape[0]
    W = WC // C

    m1 = _banded_weights(w1, W)
    m2 = _banded_weights(w2, W)

    # channel <-> lane selectors for the BN statistics regroup
    sel = jnp.kron(jnp.ones((W, 1), jnp.float32), jnp.eye(C, dtype=jnp.float32))
    sel_t = sel.T

    g1 = gamma1.reshape(1, C).astype(jnp.float32)
    b1 = beta1.reshape(1, C).astype(jnp.float32)
    g2 = gamma2.reshape(1, C).astype(jnp.float32)
    b2 = beta2.reshape(1, C).astype(jnp.float32)

    vmem = pl.BlockSpec(memory_space=pltpu.MemorySpace.VMEM)

    # 32 MiB scoped-VMEM cap is safe on every part (v5e/v6e/v7x) at these small
    # shapes; re-derive it (higher on 128-MiB parts, ~48 MiB ceiling on v7x)
    # once a row-tile grid is added.
    return pl.pallas_call(
        _residual_block_kernel,
        out_shape=jax.ShapeDtypeStruct((N, H, WC), jnp.float32),
        in_specs=[vmem] * 9,
        out_specs=vmem,
        scratch_shapes=[pltpu.VMEM((N, H, 3 * WC), jnp.bfloat16)],
        compiler_params=pltpu.CompilerParams(vmem_limit_bytes=32 * 1024 * 1024),
    )(x_rows.astype(jnp.float32), m1, m2, sel, sel_t, g1, b1, g2, b2)


@jax.jit
def residual_block(x_nchw, w1, w2, gamma1, beta1, gamma2, beta2):
    """PyTorch-layout wrapper.  x_nchw: (N, C, H, W) f32; w*: (Cout, Cin, 3, 3).

    The two transposes below are layout glue for PyTorch parity only; a
    multi-layer network should keep activations lane-dense and call
    residual_block_rows directly.
    """
    N, C, H, W = x_nchw.shape
    x_rows = jnp.transpose(x_nchw, (0, 2, 3, 1)).reshape(N, H, W * C)
    out_rows = residual_block_rows(x_rows, w1, w2, gamma1, beta1, gamma2, beta2)
    out_nhwc = out_rows.reshape(N, H, W, C)
    return jnp.transpose(out_nhwc, (0, 3, 1, 2))


def _reference(x_nchw, w1, w2, gamma1, beta1, gamma2, beta2):
    """Pure-JAX f32 reference (PyTorch .train() semantics) for a sanity check."""
    x = jnp.transpose(x_nchw, (0, 2, 3, 1))

    def conv(h, w_oihw):
        w_hwio = jnp.transpose(w_oihw, (2, 3, 1, 0))
        return jax.lax.conv_general_dilated(
            h, w_hwio, window_strides=(1, 1), padding="SAME",
            dimension_numbers=("NHWC", "HWIO", "NHWC"))

    def bn(h, g, b):
        mean = jnp.mean(h, axis=(0, 1, 2), keepdims=True)
        var = jnp.mean(jnp.square(h - mean), axis=(0, 1, 2), keepdims=True)
        return (h - mean) * jax.lax.rsqrt(var + 1e-5) * g + b

    h = jax.nn.relu(bn(conv(x, w1), gamma1, beta1))
    h = bn(conv(h, w2), gamma2, beta2)
    out = jax.nn.relu(h + x)
    return jnp.transpose(out, (0, 3, 1, 2))


if __name__ == "__main__":
    # forward() requires in_channels == out_channels and stride == 1 with
    # downsample=None for the residual add to be valid.
    N, C, H, W = 2, 8, 16, 16          # W * C = 128 -> lane-dense kernel I/O

    key = jax.random.PRNGKey(0)
    kx, kw1, kw2 = jax.random.split(key, 3)

    x = jax.random.normal(kx, (N, C, H, W), dtype=jnp.float32)
    fan_in = C * 3 * 3
    w1 = jax.random.normal(kw1, (C, C, 3, 3), dtype=jnp.float32) * (1.0 / fan_in) ** 0.5
    w2 = jax.random.normal(kw2, (C, C, 3, 3), dtype=jnp.float32) * (1.0 / fan_in) ** 0.5
    # BatchNorm2d default init: weight (gamma) = 1, bias (beta) = 0.
    # TODO(synk): running_mean/running_var buffers are not updated (forward-only).
    gamma1 = jnp.ones((C,), jnp.float32)
    beta1 = jnp.zeros((C,), jnp.float32)
    gamma2 = jnp.ones((C,), jnp.float32)
    beta2 = jnp.zeros((C,), jnp.float32)

    out = residual_block(x, w1, w2, gamma1, beta1, gamma2, beta2)
    jax.block_until_ready(out)
    assert out.shape == (N, C, H, W), out.shape

    # loose tolerance: conv matmul operands are bf16, BN / accumulation in f32
    ref = _reference(x, w1, w2, gamma1, beta1, gamma2, beta2)
    max_err = float(jnp.max(jnp.abs(out - ref)))
    assert max_err < 5e-2, f"max abs error vs f32 reference: {max_err}"

    print("KERNEL_OK")
</pallas_src>

<mosaic_0001>
module attributes {stable_mosaic.version = 11 : i64} {
  func.func @_residual_block_kernel(%arg0: memref<2x16x128xf32, #tpu.memory_space<vmem>>, %arg1: memref<384x128xbf16, #tpu.memory_space<vmem>>, %arg2: memref<384x128xbf16, #tpu.memory_space<vmem>>, %arg3: memref<128x8xf32, #tpu.memory_space<vmem>>, %arg4: memref<8x128xf32, #tpu.memory_space<vmem>>, %arg5: memref<1x8xf32, #tpu.memory_space<vmem>>, %arg6: memref<1x8xf32, #tpu.memory_space<vmem>>, %arg7: memref<1x8xf32, #tpu.memory_space<vmem>>, %arg8: memref<1x8xf32, #tpu.memory_space<vmem>>, %arg9: memref<2x16x128xf32, #tpu.memory_space<vmem>>, %arg10: memref<2x16x384xbf16, #tpu.memory_space<vmem>>) attributes {dimension_semantics = [], scalar_prefetch = 0 : i64, scratch_operands = 1 : i64, tpu.core_type = #tpu.core_type<tc>} {
    %cst = arith.constant 0.000000e+00 : bf16
    %0 = vector.broadcast %cst : bf16 to vector<2x1x128xbf16>
    %c0 = arith.constant 0 : index
    %c0_0 = arith.constant 0 : index
    %c0_1 = arith.constant 0 : index
    %1 = vector.load %arg10[%c0, %c0_0, %c0_1] : memref<2x16x384xbf16, #tpu.memory_space<vmem>>, vector<2x1x128xbf16>
    tpu.vector_store %arg10[%c0, %c0_0, %c0_1], %0 {strides = array<i32>} : memref<2x16x384xbf16, #tpu.memory_space<vmem>>, vector<2x1x128xbf16>,
    %c0_2 = arith.constant 0 : index
    %c15 = arith.constant 15 : index
    %c256 = arith.constant 256 : index
    %2 = vector.load %arg10[%c0_2, %c15, %c256] : memref<2x16x384xbf16, #tpu.memory_space<vmem>>, vector<2x1x128xbf16>
    tpu.vector_store %arg10[%c0_2, %c15, %c256], %0 {strides = array<i32>} : memref<2x16x384xbf16, #tpu.memory_space<vmem>>, vector<2x1x128xbf16>,
    %c0_3 = arith.constant 0 : index
    %c0_4 = arith.constant 0 : index
    %3 = vector.load %arg3[%c0_3, %c0_4] : memref<128x8xf32, #tpu.memory_space<vmem>>, vector<128x8xf32>
    %c0_5 = arith.constant 0 : index
    %c0_6 = arith.constant 0 : index
    %4 = vector.load %arg4[%c0_5, %c0_6] : memref<8x128xf32, #tpu.memory_space<vmem>>, vector<8x128xf32>
    %c0_7 = arith.constant 0 : index
    %c0_8 = arith.constant 0 : index
    %c0_9 = arith.constant 0 : index
    %5 = vector.load %arg0[%c0_7, %c0_8, %c0_9] : memref<2x16x128xf32, #tpu.memory_space<vmem>>, vector<2x16x128xf32>
    %6 = arith.truncf %5 : vector<2x16x128xf32> to vector<2x16x128xbf16>
    %7 = vector.extract_strided_slice %6 {offsets = [0, 0, 0], sizes = [2, 15, 128], strides = [1, 1, 1]} : vector<2x16x128xbf16> to vector<2x15x128xbf16>
    %c0_10 = arith.constant 0 : index
    %c1 = arith.constant 1 : index
    %c0_11 = arith.constant 0 : index
    %8 = vector.load %arg10[%c0_10, %c1, %c0_11] : memref<2x16x384xbf16, #tpu.memory_space<vmem>>, vector<2x15x128xbf16>
    tpu.vector_store %arg10[%c0_10, %c1, %c0_11], %7 {strides = array<i32>} : memref<2x16x384xbf16, #tpu.memory_space<vmem>>, vector<2x15x128xbf16>,
    %c0_12 = arith.constant 0 : index
    %c0_13 = arith.constant 0 : index
    %c128 = arith.constant 128 : index
    %9 = vector.load %arg10[%c0_12, %c0_13, %c128] : memref<2x16x384xbf16, #tpu.memory_space<vmem>>, vector<2x16x128xbf16>
    tpu.vector_store %arg10[%c0_12, %c0_13, %c128], %6 {strides = array<i32>} : memref<2x16x384xbf16, #tpu.memory_space<vmem>>, vector<2x16x128xbf16>,
    %10 = vector.extract_strided_slice %6 {offsets = [0, 1, 0], sizes = [2, 15, 128], strides = [1, 1, 1]} : vector<2x16x128xbf16> to vector<2x15x128xbf16>
    %c0_14 = arith.constant 0 : index
    %c0_15 = arith.constant 0 : index
    %c256_16 = arith.constant 256 : index
    %11 = vector.load %arg10[%c0_14, %c0_15, %c256_16] : memref<2x16x384xbf16, #tpu.memory_space<vmem>>, vector<2x15x128xbf16>
    tpu.vector_store %arg10[%c0_14, %c0_15, %c256_16], %10 {strides = array<i32>} : memref<2x16x384xbf16, #tpu.memory_space<vmem>>, vector<2x15x128xbf16>,
    %c0_17 = arith.constant 0 : index
    %c0_18 = arith.constant 0 : index
    %c0_19 = arith.constant 0 : index
    %12 = vector.load %arg10[%c0_17, %c0_18, %c0_19] : memref<2x16x384xbf16, #tpu.memory_space<vmem>>, vector<2x16x384xbf16>
    %13 = vector.shape_cast %12 : vector<2x16x384xbf16> to vector<32x384xbf16>
    %c0_20 = arith.constant 0 : index
    %c0_21 = arith.constant 0 : index
    %14 = vector.load %arg1[%c0_20, %c0_21] : memref<384x128xbf16, #tpu.memory_space<vmem>>, vector<384x128xbf16>
    %cst_22 = arith.constant dense<0.000000e+00> : vector<32x128xf32>
    %15 = tpu.matmul %13, %14, %cst_22 {dimension_numbers = #tpu.dot_dimension_numbers<[1], [0], [0], [1], [0, 0, 1, 1], [], []>} : vector<32x384xbf16>, vector<384x128xbf16>, vector<32x128xf32> -> vector<32x128xf32>
    %cst_23 = arith.constant dense<0.000000e+00> : vector<128xf32>
    %16 = vector.multi_reduction <add>, %15, %cst_23 [0] : vector<32x128xf32> to vector<128xf32>
    %17 = vector.shape_cast %16 : vector<128xf32> to vector<1x128xf32>
    %18 = arith.mulf %15, %15 : vector<32x128xf32>
    %cst_24 = arith.constant dense<0.000000e+00> : vector<128xf32>
    %19 = vector.multi_reduction <add>, %18, %cst_24 [0] : vector<32x128xf32> to vector<128xf32>
    %20 = vector.shape_cast %19 : vector<128xf32> to vector<1x128xf32>
    %21 = tpu.concatenate %17, %20 in 0 : vector<1x128xf32>, vector<1x128xf32> -> vector<2x128xf32>
    %cst_25 = arith.constant dense<0.000000e+00> : vector<2x8xf32>
    %22 = tpu.matmul %21, %3, %cst_25 {dimension_numbers = #tpu.dot_dimension_numbers<[1], [0], [0], [1], [0, 0, 1, 1], [], []>} : vector<2x128xf32>, vector<128x8xf32>, vector<2x8xf32> -> vector<2x8xf32>
    %23 = vector.extract_strided_slice %22 {offsets = [0, 0], sizes = [1, 8], strides = [1, 1]} : vector<2x8xf32> to vector<1x8xf32>
    %cst_26 = arith.constant 0.001953125 : f32
    %24 = vector.broadcast %cst_26 : f32 to vector<1x8xf32>
    %25 = arith.mulf %23, %24 : vector<1x8xf32>
    %26 = vector.extract_strided_slice %22 {offsets = [1, 0], sizes = [1, 8], strides = [1, 1]} : vector<2x8xf32> to vector<1x8xf32>
    %cst_27 = arith.constant 0.001953125 : f32
    %27 = vector.broadcast %cst_27 : f32 to vector<1x8xf32>
    %28 = arith.mulf %26, %27 : vector<1x8xf32>
    %29 = arith.mulf %25, %25 : vector<1x8xf32>
    %30 = arith.subf %28, %29 : vector<1x8xf32>
    %c0_28 = arith.constant 0 : index
    %c0_29 = arith.constant 0 : index
    %31 = vector.load %arg5[%c0_28, %c0_29] : memref<1x8xf32, #tpu.memory_space<vmem>>, vector<1x8xf32>
    %cst_30 = arith.constant 9.99999974E-6 : f32
    %32 = vector.broadcast %cst_30 : f32 to vector<1x8xf32>
    %33 = arith.addf %30, %32 : vector<1x8xf32>
    %34 = math.rsqrt %33 : vector<1x8xf32>
    %35 = arith.mulf %31, %34 : vector<1x8xf32>
    %c0_31 = arith.constant 0 : index
    %c0_32 = arith.constant 0 : index
    %36 = vector.load %arg6[%c0_31, %c0_32] : memref<1x8xf32, #tpu.memory_space<vmem>>, vector<1x8xf32>
    %37 = arith.mulf %25, %35 : vector<1x8xf32>
    %38 = arith.subf %36, %37 : vector<1x8xf32>
    %39 = tpu.concatenate %35, %38 in 0 : vector<1x8xf32>, vector<1x8xf32> -> vector<2x8xf32>
    %cst_33 = arith.constant dense<0.000000e+00> : vector<2x128xf32>
    %40 = tpu.matmul %39, %4, %cst_33 {dimension_numbers = #tpu.dot_dimension_numbers<[1], [0], [0], [1], [0, 0, 1, 1], [], []>} : vector<2x8xf32>, vector<8x128xf32>, vector<2x128xf32> -> vector<2x128xf32>
    %41 = vector.extract_strided_slice %40 {offsets = [0, 0], sizes = [1, 128], strides = [1, 1]} : vector<2x128xf32> to vector<1x128xf32>
    %42 = vector.broadcast %41 : vector<1x128xf32> to vector<32x128xf32>
    %43 = arith.mulf %15, %42 : vector<32x128xf32>
    %44 = vector.extract_strided_slice %40 {offsets = [1, 0], sizes = [1, 128], strides = [1, 1]} : vector<2x128xf32> to vector<1x128xf32>
    %45 = vector.broadcast %44 : vector<1x128xf32> to vector<32x128xf32>
    %46 = arith.addf %43, %45 : vector<32x128xf32>
    %cst_34 = arith.constant 0.000000e+00 : f32
    %47 = vector.broadcast %cst_34 : f32 to vector<32x128xf32>
    %48 = arith.maximumf %46, %47 : vector<32x128xf32>
    %49 = arith.truncf %48 : vector<32x128xf32> to vector<32x128xbf16>
    %50 = vector.shape_cast %49 : vector<32x128xbf16> to vector<2x16x128xbf16>
    %51 = vector.extract_strided_slice %50 {offsets = [0, 0, 0], sizes = [2, 15, 128], strides = [1, 1, 1]} : vector<2x16x128xbf16> to vector<2x15x128xbf16>
    %c0_35 = arith.constant 0 : index
    %c1_36 = arith.constant 1 : index
    %c0_37 = arith.constant 0 : index
    %52 = vector.load %arg10[%c0_35, %c1_36, %c0_37] : memref<2x16x384xbf16, #tpu.memory_space<vmem>>, vector<2x15x128xbf16>
    tpu.vector_store %arg10[%c0_35, %c1_36, %c0_37], %51 {strides = array<i32>} : memref<2x16x384xbf16, #tpu.memory_space<vmem>>, vector<2x15x128xbf16>,
    %c0_38 = arith.constant 0 : index
    %c0_39 = arith.constant 0 : index
    %c128_40 = arith.constant 128 : index
    %53 = vector.load %arg10[%c0_38, %c0_39, %c128_40] : memref<2x16x384xbf16, #tpu.memory_space<vmem>>, vector<2x16x128xbf16>
    tpu.vector_store %arg10[%c0_38, %c0_39, %c128_40], %50 {strides = array<i32>} : memref<2x16x384xbf16, #tpu.memory_space<vmem>>, vector<2x16x128xbf16>,
    %54 = vector.extract_strided_slice %50 {offsets = [0, 1, 0], sizes = [2, 15, 128], strides = [1, 1, 1]} : vector<2x16x128xbf16> to vector<2x15x128xbf16>
    %c0_41 = arith.constant 0 : index
    %c0_42 = arith.constant 0 : index
    %c256_43 = arith.constant 256 : index
    %55 = vector.load %arg10[%c0_41, %c0_42, %c256_43] : memref<2x16x384xbf16, #tpu.memory_space<vmem>>, vector<2x15x128xbf16>
    tpu.vector_store %arg10[%c0_41, %c0_42, %c256_43], %54 {strides = array<i32>} : memref<2x16x384xbf16, #tpu.memory_space<vmem>>, vector<2x15x128xbf16>,
    %c0_44 = arith.constant 0 : index
    %c0_45 = arith.constant 0 : index
    %c0_46 = arith.constant 0 : index
    %56 = vector.load %arg10[%c0_44, %c0_45, %c0_46] : memref<2x16x384xbf16, #tpu.memory_space<vmem>>, vector<2x16x384xbf16>
    %57 = vector.shape_cast %56 : vector<2x16x384xbf16> to vector<32x384xbf16>
    %c0_47 = arith.constant 0 : index
    %c0_48 = arith.constant 0 : index
    %58 = vector.load %arg2[%c0_47, %c0_48] : memref<384x128xbf16, #tpu.memory_space<vmem>>, vector<384x128xbf16>
    %cst_49 = arith.constant dense<0.000000e+00> : vector<32x128xf32>
    %59 = tpu.matmul %57, %58, %cst_49 {dimension_numbers = #tpu.dot_dimension_numbers<[1], [0], [0], [1], [0, 0, 1, 1], [], []>} : vector<32x384xbf16>, vector<384x128xbf16>, vector<32x128xf32> -> vector<32x128xf32>
    %cst_50 = arith.constant dense<0.000000e+00> : vector<128xf32>
    %60 = vector.multi_reduction <add>, %59, %cst_50 [0] : vector<32x128xf32> to vector<128xf32>
    %61 = vector.shape_cast %60 : vector<128xf32> to vector<1x128xf32>
    %62 = arith.mulf %59, %59 : vector<32x128xf32>
    %cst_51 = arith.constant dense<0.000000e+00> : vector<128xf32>
    %63 = vector.multi_reduction <add>, %62, %cst_51 [0] : vector<32x128xf32> to vector<128xf32>
    %64 = vector.shape_cast %63 : vector<128xf32> to vector<1x128xf32>
    %65 = tpu.concatenate %61, %64 in 0 : vector<1x128xf32>, vector<1x128xf32> -> vector<2x128xf32>
    %cst_52 = arith.constant dense<0.000000e+00> : vector<2x8xf32>
    %66 = tpu.matmul %65, %3, %cst_52 {dimension_numbers = #tpu.dot_dimension_numbers<[1], [0], [0], [1], [0, 0, 1, 1], [], []>} : vector<2x128xf32>, vector<128x8xf32>, vector<2x8xf32> -> vector<2x8xf32>
    %67 = vector.extract_strided_slice %66 {offsets = [0, 0], sizes = [1, 8], strides = [1, 1]} : vector<2x8xf32> to vector<1x8xf32>
    %cst_53 = arith.constant 0.001953125 : f32
    %68 = vector.broadcast %cst_53 : f32 to vector<1x8xf32>
    %69 = arith.mulf %67, %68 : vector<1x8xf32>
    %70 = vector.extract_strided_slice %66 {offsets = [1, 0], sizes = [1, 8], strides = [1, 1]} : vector<2x8xf32> to vector<1x8xf32>
    %cst_54 = arith.constant 0.001953125 : f32
    %71 = vector.broadcast %cst_54 : f32 to vector<1x8xf32>
    %72 = arith.mulf %70, %71 : vector<1x8xf32>
    %73 = arith.mulf %69, %69 : vector<1x8xf32>
    %74 = arith.subf %72, %73 : vector<1x8xf32>
    %c0_55 = arith.constant 0 : index
    %c0_56 = arith.constant 0 : index
    %75 = vector.load %arg7[%c0_55, %c0_56] : memref<1x8xf32, #tpu.memory_space<vmem>>, vector<1x8xf32>
    %cst_57 = arith.constant 9.99999974E-6 : f32
    %76 = vector.broadcast %cst_57 : f32 to vector<1x8xf32>
    %77 = arith.addf %74, %76 : vector<1x8xf32>
    %78 = math.rsqrt %77 : vector<1x8xf32>
    %79 = arith.mulf %75, %78 : vector<1x8xf32>
    %c0_58 = arith.constant 0 : index
    %c0_59 = arith.constant 0 : index
    %80 = vector.load %arg8[%c0_58, %c0_59] : memref<1x8xf32, #tpu.memory_space<vmem>>, vector<1x8xf32>
    %81 = arith.mulf %69, %79 : vector<1x8xf32>
    %82 = arith.subf %80, %81 : vector<1x8xf32>
    %83 = tpu.concatenate %79, %82 in 0 : vector<1x8xf32>, vector<1x8xf32> -> vector<2x8xf32>
    %cst_60 = arith.constant dense<0.000000e+00> : vector<2x128xf32>
    %84 = tpu.matmul %83, %4, %cst_60 {dimension_numbers = #tpu.dot_dimension_numbers<[1], [0], [0], [1], [0, 0, 1, 1], [], []>} : vector<2x8xf32>, vector<8x128xf32>, vector<2x128xf32> -> vector<2x128xf32>
    %85 = vector.extract_strided_slice %84 {offsets = [0, 0], sizes = [1, 128], strides = [1, 1]} : vector<2x128xf32> to vector<1x128xf32>
    %86 = vector.broadcast %85 : vector<1x128xf32> to vector<32x128xf32>
    %87 = arith.mulf %59, %86 : vector<32x128xf32>
    %88 = vector.extract_strided_slice %84 {offsets = [1, 0], sizes = [1, 128], strides = [1, 1]} : vector<2x128xf32> to vector<1x128xf32>
    %89 = vector.broadcast %88 : vector<1x128xf32> to vector<32x128xf32>
    %90 = arith.addf %87, %89 : vector<32x128xf32>
    %c0_61 = arith.constant 0 : index
    %c0_62 = arith.constant 0 : index
    %c0_63 = arith.constant 0 : index
    %91 = vector.load %arg0[%c0_61, %c0_62, %c0_63] : memref<2x16x128xf32, #tpu.memory_space<vmem>>, vector<2x16x128xf32>
    %92 = vector.shape_cast %91 : vector<2x16x128xf32> to vector<32x128xf32>
    %93 = arith.addf %90, %92 : vector<32x128xf32>
    %cst_64 = arith.constant 0.000000e+00 : f32
    %94 = vector.broadcast %cst_64 : f32 to vector<32x128xf32>
    %95 = arith.maximumf %93, %94 : vector<32x128xf32>
    %96 = vector.shape_cast %95 : vector<32x128xf32> to vector<2x16x128xf32>
    %c0_65 = arith.constant 0 : index
    %c0_66 = arith.constant 0 : index
    %c0_67 = arith.constant 0 : index
    %97 = vector.load %arg9[%c0_65, %c0_66, %c0_67] : memref<2x16x128xf32, #tpu.memory_space<vmem>>, vector<2x16x128xf32>
    tpu.vector_store %arg9[%c0_65, %c0_66, %c0_67], %96 {strides = array<i32>} : memref<2x16x128xf32, #tpu.memory_space<vmem>>, vector<2x16x128xf32>,
    return
  }
}

</mosaic_0001>

<llo_original>
// kernel: residual_block_rows.1
$region0: #{residual_block_rows.1}
  #allocation0 [shape = 'u32[]', space=smem, size = 0x4, offset = 0x4, fixed_abs, tag = 'smem constant byte address 0x4 - core index']
  #allocation1 [shape = 'u32[144,128]{1,0:T(1,128)}', space=vmem, size = 0x12000, scoped, tag = 'internal scratch']
  #allocation2 [shape = 'bf16[2,16,384]{2,1,0:T(8,128)(2,1)}', space=vmem, size = 0x6000, scoped, tag = 'scratch operand']
  %s0 = inlined_call_operand.vmem [shape: f32[2,16,128], index: 0, kind: input, shape index: {}]
  %s1 = inlined_call_operand.vmem [shape: bf16[384,128], index: 1, kind: input, shape index: {}]
  %s2 = inlined_call_operand.vmem [shape: bf16[384,128], index: 2, kind: input, shape index: {}]
  %s3 = inlined_call_operand.vmem [shape: f32[128,8], index: 3, kind: input, shape index: {}]
  %s4 = inlined_call_operand.vmem [shape: f32[8,128], index: 4, kind: input, shape index: {}]
  %s5 = inlined_call_operand.vmem [shape: f32[1,8], index: 5, kind: input, shape index: {}]
  %s6 = inlined_call_operand.vmem [shape: f32[1,8], index: 6, kind: input, shape index: {}]
  %s7 = inlined_call_operand.vmem [shape: f32[1,8], index: 7, kind: input, shape index: {}]
  %s8 = inlined_call_operand.vmem [shape: f32[1,8], index: 8, kind: input, shape index: {}]
  %s9 = inlined_call_operand.hbm [shape: f32[2,16,128], index: 9, kind: output, shape index: {}]
  %s10 = sld [smem:[#allocation0]]
  $region46: #{residual_block_rows.1} parent=0
    _
  %s12 = ssub.s32 1, %s10
  %s13 = scalar_select 0, %s12, %s10
  $region1: #{residual_block_rows.1} parent=0
    #allocation3 [shape = 'u8[16384]{0}', space=vmem, size = 0x4000, scoped, tag = 'output window, operand 0, single buffered']
    #allocation4 [shape = 's32[1]{0}', space=sflag, size = 0x4, scoped, tag = 'scoped memory for residual_block_rows.1']
    %14 = vsyncpa [#allocation4], 0
    // Predicated region
    $region2: #{residual_block_rows.1} parent=1 // pred_check
      _
    $region3: #{residual_block_rows.1} parent=1 // pred_check_branch
      %16 = sbr.rel (0) target = $region5
    $region4: #{residual_block_rows.1} parent=1 // pred_region
      _
    $region5: #{residual_block_rows.1} parent=1 // pred_fallthru
      _
    // Predicated region
    $region6: #{residual_block_rows.1} parent=1 // pred_check
      _
    $region7: #{residual_block_rows.1} parent=1 // pred_check_branch
      %18 = sbr.rel (0) target = $region9
    $region8: #{residual_block_rows.1} parent=1 // pred_region
      _
    $region9: #{residual_block_rows.1} parent=1 // pred_fallthru
      _
    // Predicated region
    $region10: #{residual_block_rows.1} parent=1 // pred_check
      _
    $region11: #{residual_block_rows.1} parent=1 // pred_check_branch
      %20 = sbr.rel (0) target = $region13
    $region12: #{residual_block_rows.1} parent=1 // pred_region
      _
    $region13: #{residual_block_rows.1} parent=1 // pred_fallthru
      _
    // Predicated region
    $region14: #{residual_block_rows.1} parent=1 // pred_check
      _
    $region15: #{residual_block_rows.1} parent=1 // pred_check_branch
      %22 = sbr.rel (0) target = $region17
    $region16: #{residual_block_rows.1} parent=1 // pred_region
      _
    $region17: #{residual_block_rows.1} parent=1 // pred_fallthru
      _
    // Predicated region
    $region18: #{residual_block_rows.1} parent=1 // pred_check
      _
    $region19: #{residual_block_rows.1} parent=1 // pred_check_branch
      %24 = sbr.rel (0) target = $region21
    $region20: #{residual_block_rows.1} parent=1 // pred_region
      _
    $region21: #{residual_block_rows.1} parent=1 // pred_fallthru
      _
    // Predicated region
    $region22: #{residual_block_rows.1} parent=1 // pred_check
      _
    $region23: #{residual_block_rows.1} parent=1 // pred_check_branch
      %26 = sbr.rel (0) target = $region25
    $region24: #{residual_block_rows.1} parent=1 // pred_region
      _
    $region25: #{residual_block_rows.1} parent=1 // pred_fallthru
      _
    // Predicated region
    $region26: #{residual_block_rows.1} parent=1 // pred_check
      _
    $region27: #{residual_block_rows.1} parent=1 // pred_check_branch
      %28 = sbr.rel (0) target = $region29
    $region28: #{residual_block_rows.1} parent=1 // pred_region
      _
    $region29: #{residual_block_rows.1} parent=1 // pred_fallthru
      _
    // Predicated region
    $region30: #{residual_block_rows.1} parent=1 // pred_check
      _
    $region31: #{residual_block_rows.1} parent=1 // pred_check_branch
      %30 = sbr.rel (0) target = $region33
    $region32: #{residual_block_rows.1} parent=1 // pred_region
      _
    $region33: #{residual_block_rows.1} parent=1 // pred_fallthru
      _
    // Predicated region
    $region34: #{residual_block_rows.1} parent=1 // pred_check
      _
    $region35: #{residual_block_rows.1} parent=1 // pred_check_branch
      %32 = sbr.rel (0) target = $region37
    $region36: #{residual_block_rows.1} parent=1 // pred_region
      _
    $region37: #{residual_block_rows.1} parent=1 // pred_fallthru
      _
    %vm34 = vcmask 1040384
    %vm35 = vsmask.f32 256
    %vm36 = vmand %vm34, %vm35
    %v37 = vld [vmem:[#allocation2] sm:$0x1]
    %v38 = vsel %vm36, 0, %v37
    %39 = vst [vmem:[#allocation2] sm:$0x1] %v38
    %v40 = vld [vmem:[#allocation2 + $0x18] sm:$0x1]
    %v41 = vsel %vm36, 0, %v40
    %42 = vst [vmem:[#allocation2 + $0x18] sm:$0x1] %v41
    %vm43 = vcmask 1043459
    %vm44 = vsmask.f32 7950
    %vm45 = vmand %vm43, %vm44
    %v46 = vld [vmem:[#allocation2 + $0x14] sm:$0x8]
    %v47 = vsel %vm45, 0, %v46
    %48 = vst [vmem:[#allocation2 + $0x14] sm:$0x8] %v47
    %v49 = vld [vmem:[#allocation2 + $0x2c] sm:$0x8]
    %v50 = vsel %vm45, 0, %v49
    %51 = vst [vmem:[#allocation2 + $0x2c] sm:$0x8] %v50
    %v52 = vld [vmem:[%s3] sm:$0xff]
    %v53 = vld [vmem:[%s3 + $0x8] sm:$0xff]
    %v54 = vld [vmem:[%s3 + $0x10] sm:$0xff]
    %v55 = vld [vmem:[%s3 + $0x18] sm:$0xff]
    %v56 = vld [vmem:[%s3 + $0x20] sm:$0xff]
    %v57 = vld [vmem:[%s3 + $0x28] sm:$0xff]
    %v58 = vld [vmem:[%s3 + $0x30] sm:$0xff]
    %v59 = vld [vmem:[%s3 + $0x38] sm:$0xff]
    %v60 = vld [vmem:[%s3 + $0x40] sm:$0xff]
    %v61 = vld [vmem:[%s3 + $0x48] sm:$0xff]
    %v62 = vld [vmem:[%s3 + $0x50] sm:$0xff]
    %v63 = vld [vmem:[%s3 + $0x58] sm:$0xff]
    %v64 = vld [vmem:[%s3 + $0x60] sm:$0xff]
    %v65 = vld [vmem:[%s3 + $0x68] sm:$0xff]
    %v66 = vld [vmem:[%s3 + $0x70] sm:$0xff]
    %v67 = vld [vmem:[%s3 + $0x78] sm:$0xff]
    %v68 = vld [vmem:[%s4] sm:$0xff]
    %v69 = vld [vmem:[%s0] sm:$0xff]
    %v70 = vld [vmem:[%s0 + $0x8] sm:$0xff]
    %v71 = vld [vmem:[%s0 + $0x10] sm:$0xff]
    %v72 = vld [vmem:[%s0 + $0x18] sm:$0xff]
    %v73 = vpack.c.bf16 %v70, %v69
    %v74 = vpack.c.bf16 %v72, %v71
    %v77 = vunpack.c.l.b16 %v73
    %v78 = vunpack.c.h.b16 %v73
    %v79 = vunpack.c.l.b16 %v74
    %v80 = vunpack.c.h.b16 %v74
    %v81 = vpack.c.b16 %v77, %v77
    %v82 = vpack.c.b16 %v78, %v78
    %v83 = vpack.c.b16 %v79, %v79
    %v84 = vpack.c.b16 %v80, %v80
    %vm85 = vsmask.f32 4368
    %vm86 = vmor %vm35, %vm85
    %v88 = vshrl.u32 %v81, 16
    %v90 = vrot.slane %v88, 7
    %v91 = vshll.u32 %v81, 16
    %v93 = vor.u32 %v90, %v91
    %v94 = vrot.slane %v90, 4
    %v96 = vshrl.u32 %v82, 16
    %v98 = vrot.slane %v96, 7
    %v99 = vshll.u32 %v82, 16
    %v101 = vor.u32 %v98, %v99
    %v102 = vsel %vm86, %v94, %v101
    %v104 = vshrl.u32 %v83, 16
    %v106 = vrot.slane %v104, 7
    %v107 = vshll.u32 %v83, 16
    %v109 = vor.u32 %v106, %v107
    %v110 = vrot.slane %v106, 4
    %v112 = vshrl.u32 %v84, 16
    %v114 = vrot.slane %v112, 7
    %v115 = vshll.u32 %v84, 16
    %v117 = vor.u32 %v114, %v115
    %v118 = vsel %vm86, %v110, %v117
    %vm123 = vcmask 1043456
    %vm124 = vsmask.f32 7938
    %vm125 = vmand %vm123, %vm124
    %v126 = vld [vmem:[#allocation2] sm:$0xf]
    %v127 = vsel %vm125, %v93, %v126
    %128 = vst [vmem:[#allocation2] sm:$0xf] %v127
    %129 = vst [vmem:[#allocation2 + $0xc] sm:$0xf] %v102
    %v130 = vld [vmem:[#allocation2 + $0x18] sm:$0xf]
    %v131 = vsel %vm125, %v109, %v130
    %132 = vst [vmem:[#allocation2 + $0x18] sm:$0xf] %v131
    %133 = vst [vmem:[#allocation2 + $0x24] sm:$0xf] %v118
    %138 = vst [vmem:[#allocation2 + $0x4] sm:$0xf] %v81
    %139 = vst [vmem:[#allocation2 + $0x10] sm:$0xf] %v82
    %140 = vst [vmem:[#allocation2 + $0x1c] sm:$0xf] %v83
    %141 = vst [vmem:[#allocation2 + $0x28] sm:$0xf] %v84
    %vm142 = vsmask.f32 3328
    %vm143 = vsmask.f32 7440
    %vm144 = vmor %vm142, %vm143
    %v145 = vrot.slane %v88, 4
    %v146 = vrot.slane %v91, 5
    %v147 = vor.u32 %v145, %v146
    %v148 = vrot.slane %v147, 4
    %v149 = vrot.slane %v99, 5
    %v150 = vsel %vm144, %v148, %v149
    %v151 = vrot.slane %v96, 4
    %v152 = vor.u32 %v151, %v149
    %v153 = vrot.slane %v152, 4
    %v154 = vrot.slane %v104, 4
    %v155 = vrot.slane %v107, 5
    %v156 = vor.u32 %v154, %v155
    %v157 = vrot.slane %v156, 4
    %v158 = vrot.slane %v115, 5
    %v159 = vsel %vm144, %v157, %v158
    %v160 = vrot.slane %v112, 4
    %v161 = vor.u32 %v160, %v158
    %v162 = vrot.slane %v161, 4
    %167 = vst [vmem:[#allocation2 + $0x8] sm:$0xf] %v150
    %vm168 = vmand %vm123, %vm142
    %v169 = vld [vmem:[#allocation2 + $0x14] sm:$0xf]
    %v170 = vsel %vm168, %v153, %v169
    %171 = vst [vmem:[#allocation2 + $0x14] sm:$0xf] %v170
    %172 = vst [vmem:[#allocation2 + $0x20] sm:$0xf] %v159
    %v173 = vld [vmem:[#allocation2 + $0x2c] sm:$0xf]
    %v174 = vsel %vm168, %v162, %v173
    %175 = vst [vmem:[#allocation2 + $0x2c] sm:$0xf] %v174
    %v176 = vld [vmem:[#allocation2] sm:$0xff]
    %v177 = vld [vmem:[#allocation2 + $0x8] sm:$0xf]
    %v178 = vld [vmem:[#allocation2 + $0xc] sm:$0xff]
    %v179 = vld [vmem:[#allocation2 + $0x14] sm:$0xf]
    %v180 = vld [vmem:[#allocation2 + $0x18] sm:$0xff]
    %v181 = vld [vmem:[#allocation2 + $0x20] sm:$0xf]
    %v182 = vld [vmem:[#allocation2 + $0x24] sm:$0xff]
    %v183 = vld [vmem:[#allocation2 + $0x2c] sm:$0xf]
    %v184 = vld [vmem:[%s1] sm:$0xf]
    %v185 = vld [vmem:[%s1 + $0x4] sm:$0xf]
    %v186 = vld [vmem:[%s1 + $0x8] sm:$0xf]
    %v187 = vld [vmem:[%s1 + $0xc] sm:$0xf]
    %v188 = vld [vmem:[%s1 + $0x10] sm:$0xf]
    %v189 = vld [vmem:[%s1 + $0x14] sm:$0xf]
    %v190 = vld [vmem:[%s1 + $0x18] sm:$0xf]
    %v191 = vld [vmem:[%s1 + $0x1c] sm:$0xf]
    %v192 = vld [vmem:[%s1 + $0x20] sm:$0xf]
    %v193 = vld [vmem:[%s1 + $0x24] sm:$0xf]
    %v194 = vld [vmem:[%s1 + $0x28] sm:$0xf]
    %v195 = vld [vmem:[%s1 + $0x2c] sm:$0xf]
    %v196 = vld [vmem:[%s1 + $0x30] sm:$0xf]
    %v197 = vld [vmem:[%s1 + $0x34] sm:$0xf]
    %v198 = vld [vmem:[%s1 + $0x38] sm:$0xf]
    %v199 = vld [vmem:[%s1 + $0x3c] sm:$0xf]
    %v200 = vld [vmem:[%s1 + $0x40] sm:$0xf]
    %v201 = vld [vmem:[%s1 + $0x44] sm:$0xf]
    %v202 = vld [vmem:[%s1 + $0x48] sm:$0xf]
    %v203 = vld [vmem:[%s1 + $0x4c] sm:$0xf]
    %v204 = vld [vmem:[%s1 + $0x50] sm:$0xf]
    %v205 = vld [vmem:[%s1 + $0x54] sm:$0xf]
    %v206 = vld [vmem:[%s1 + $0x58] sm:$0xf]
    %v207 = vld [vmem:[%s1 + $0x5c] sm:$0xf]
    %v208 = vld [vmem:[%s1 + $0x60] sm:$0xf]
    %v209 = vld [vmem:[%s1 + $0x64] sm:$0xf]
    %v210 = vld [vmem:[%s1 + $0x68] sm:$0xf]
    %v211 = vld [vmem:[%s1 + $0x6c] sm:$0xf]
    %v212 = vld [vmem:[%s1 + $0x70] sm:$0xf]
    %v213 = vld [vmem:[%s1 + $0x74] sm:$0xf]
    %v214 = vld [vmem:[%s1 + $0x78] sm:$0xf]
    %v215 = vld [vmem:[%s1 + $0x7c] sm:$0xf]
    %v216 = vld [vmem:[%s1 + $0x80] sm:$0xf]
    %v217 = vld [vmem:[%s1 + $0x84] sm:$0xf]
    %v218 = vld [vmem:[%s1 + $0x88] sm:$0xf]
    %v219 = vld [vmem:[%s1 + $0x8c] sm:$0xf]
    %v220 = vld [vmem:[%s1 + $0x90] sm:$0xf]
    %v221 = vld [vmem:[%s1 + $0x94] sm:$0xf]
    %v222 = vld [vmem:[%s1 + $0x98] sm:$0xf]
    %v223 = vld [vmem:[%s1 + $0x9c] sm:$0xf]
    %v224 = vld [vmem:[%s1 + $0xa0] sm:$0xf]
    %v225 = vld [vmem:[%s1 + $0xa4] sm:$0xf]
    %v226 = vld [vmem:[%s1 + $0xa8] sm:$0xf]
    %v227 = vld [vmem:[%s1 + $0xac] sm:$0xf]
    %v228 = vld [vmem:[%s1 + $0xb0] sm:$0xf]
    %v229 = vld [vmem:[%s1 + $0xb4] sm:$0xf]
    %v230 = vld [vmem:[%s1 + $0xb8] sm:$0xf]
    %v231 = vld [vmem:[%s1 + $0xbc] sm:$0xf]
    %v240 = vunpack.c.l.b16 %v176
    %v241 = vunpack.c.h.b16 %v176
    %v242 = vunpack.c.l.b16 %v177
    %v243 = vunpack.c.l.b16 %v178
    %v244 = vunpack.c.h.b16 %v178
    %v245 = vunpack.c.l.b16 %v179
    %v246 = vunpack.c.l.b16 %v180
    %v247 = vunpack.c.h.b16 %v180
    %v248 = vunpack.c.l.b16 %v181
    %v249 = vunpack.c.l.b16 %v182
    %v250 = vunpack.c.h.b16 %v182
    %v251 = vunpack.c.l.b16 %v183
    %v252 = vpack.c.b16 %v243, %v240
    %v253 = vpack.c.b16 %v244, %v241
    %v254 = vpack.c.b16 %v245, %v242
    %v255 = vpack.c.b16 %v249, %v246
    %v256 = vpack.c.b16 %v250, %v247
    %v257 = vpack.c.b16 %v251, %v248
    %v312 = vunpack.c.l.b16 %v184
    %v313 = vunpack.c.l.b16 %v185
    %v314 = vunpack.c.l.b16 %v186
    %v315 = vunpack.c.l.b16 %v187
    %v316 = vunpack.c.l.b16 %v188
    %v317 = vunpack.c.l.b16 %v189
    %v318 = vunpack.c.l.b16 %v190
    %v319 = vunpack.c.l.b16 %v191
    %v320 = vunpack.c.l.b16 %v192
    %v321 = vunpack.c.l.b16 %v193
    %v322 = vunpack.c.l.b16 %v194
    %v323 = vunpack.c.l.b16 %v195
    %v324 = vunpack.c.l.b16 %v196
    %v325 = vunpack.c.l.b16 %v197
    %v326 = vunpack.c.l.b16 %v198
    %v327 = vunpack.c.l.b16 %v199
    %v328 = vunpack.c.l.b16 %v200
    %v329 = vunpack.c.l.b16 %v201
    %v330 = vunpack.c.l.b16 %v202
    %v331 = vunpack.c.l.b16 %v203
    %v332 = vunpack.c.l.b16 %v204
    %v333 = vunpack.c.l.b16 %v205
    %v334 = vunpack.c.l.b16 %v206
    %v335 = vunpack.c.l.b16 %v207
    %v336 = vunpack.c.l.b16 %v208
    %v337 = vunpack.c.l.b16 %v209
    %v338 = vunpack.c.l.b16 %v210
    %v339 = vunpack.c.l.b16 %v211
    %v340 = vunpack.c.l.b16 %v212
    %v341 = vunpack.c.l.b16 %v213
    %v342 = vunpack.c.l.b16 %v214
    %v343 = vunpack.c.l.b16 %v215
    %v344 = vunpack.c.l.b16 %v216
    %v345 = vunpack.c.l.b16 %v217
    %v346 = vunpack.c.l.b16 %v218
    %v347 = vunpack.c.l.b16 %v219
    %v348 = vunpack.c.l.b16 %v220
    %v349 = vunpack.c.l.b16 %v221
    %v350 = vunpack.c.l.b16 %v222
    %v351 = vunpack.c.l.b16 %v223
    %v352 = vunpack.c.l.b16 %v224
    %v353 = vunpack.c.l.b16 %v225
    %v354 = vunpack.c.l.b16 %v226
    %v355 = vunpack.c.l.b16 %v227
    %v356 = vunpack.c.l.b16 %v228
    %v357 = vunpack.c.l.b16 %v229
    %v358 = vunpack.c.l.b16 %v230
    %v359 = vunpack.c.l.b16 %v231
    %v360 = vpack.c.b16 %v313, %v312
    %v361 = vpack.c.b16 %v315, %v314
    %v362 = vpack.c.b16 %v317, %v316
    %v363 = vpack.c.b16 %v319, %v318
    %v364 = vpack.c.b16 %v321, %v320
    %v365 = vpack.c.b16 %v323, %v322
    %v366 = vpack.c.b16 %v325, %v324
    %v367 = vpack.c.b16 %v327, %v326
    %v368 = vpack.c.b16 %v329, %v328
    %v369 = vpack.c.b16 %v331, %v330
    %v370 = vpack.c.b16 %v333, %v332
    %v371 = vpack.c.b16 %v335, %v334
    %v372 = vpack.c.b16 %v337, %v336
    %v373 = vpack.c.b16 %v339, %v338
    %v374 = vpack.c.b16 %v341, %v340
    %v375 = vpack.c.b16 %v343, %v342
    %v376 = vpack.c.b16 %v345, %v344
    %v377 = vpack.c.b16 %v347, %v346
    %v378 = vpack.c.b16 %v349, %v348
    %v379 = vpack.c.b16 %v351, %v350
    %v380 = vpack.c.b16 %v353, %v352
    %v381 = vpack.c.b16 %v355, %v354
    %v382 = vpack.c.b16 %v357, %v356
    %v383 = vpack.c.b16 %v359, %v358
    %408 = vmatprep.subr.bf16.mxu0 0
    %409 = vmatpush1.bf16.msra.mxu0 %v367
    %410 = vmatprep.subr.bf16.mxu0 0
    %411 = vmatpush1.bf16.msra.mxu0 %v366
    %412 = vmatprep.subr.bf16.mxu0 0
    %413 = vmatpush1.bf16.msra.mxu0 %v365
    %414 = vmatprep.subr.bf16.mxu0 0
    %415 = vmatpush1.bf16.msra.mxu0 %v364
    %416 = vmatprep.subr.bf16.mxu0 0
    %417 = vmatpush1.bf16.msra.mxu0 %v363
    %418 = vmatprep.subr.bf16.mxu0 0
    %419 = vmatpush1.bf16.msra.mxu0 %v362
    %420 = vmatprep.subr.bf16.mxu0 0
    %421 = vmatpush1.bf16.msra.mxu0 %v361
    %422 = vmatprep.subr.bf16.mxu0 0
    %423 = vmatpush1.bf16.msra.mxu0 %v360
    %424 = vmatprep.subr.bf16.mxu0 0
    %425 = vmatpush2.bf16.msra.mxu0 %v375
    %426 = vmatprep.subr.bf16.mxu0 0
    %427 = vmatpush2.bf16.msra.mxu0 %v374
    %428 = vmatprep.subr.bf16.mxu0 0
    %429 = vmatpush2.bf16.msra.mxu0 %v373
    %430 = vmatprep.subr.bf16.mxu0 0
    %431 = vmatpush2.bf16.msra.mxu0 %v372
    %432 = vmatprep.subr.bf16.mxu0 0
    %433 = vmatpush2.bf16.msra.mxu0 %v371
    %434 = vmatprep.subr.bf16.mxu0 0
    %435 = vmatpush2.bf16.msra.mxu0 %v370
    %436 = vmatprep.subr.bf16.mxu0 0
    %437 = vmatpush2.bf16.msra.mxu0 %v369
    %438 = vmatprep.subr.bf16.mxu0 0
    %439 = vmatpush2.bf16.msra.mxu0 %v368
    %440 = vmatprep.mubr.bf16.mxu0 %v253
    %441 = vmatmul.mubr.bf16.gmra.mxu0 %v252
    %v442 = vpop.f32.mrf.mxu0
    %v443 = vadd.f32 0.0, %v442
    %v444 = vpop.f32.mrf.mxu0
    %v445 = vpop.f32.mrf.mxu0
    %v446 = vadd.f32 0.0, %v445
    %v447 = vpop.f32.mrf.mxu0
    %448 = vmatprep.mubr.bf16.mxu0 %v256
    %449 = vmatmul.mubr.bf16.gmra.mxu0 %v255
    %v450 = vpop.f32.mrf.mxu0
    %v451 = vadd.f32 0.0, %v450
    %v452 = vpop.f32.mrf.mxu0
    %v453 = vpop.f32.mrf.mxu0
    %v454 = vadd.f32 0.0, %v453
    %v455 = vpop.f32.mrf.mxu0
    %456 = vdwg.mxu0
    %457 = vmatprep.subr.bf16.mxu0 0
    %458 = vmatpush1.bf16.msra.mxu0 %v383
    %459 = vmatprep.subr.bf16.mxu0 0
    %460 = vmatpush1.bf16.msra.mxu0 %v382
    %461 = vmatprep.subr.bf16.mxu0 0
    %462 = vmatpush1.bf16.msra.mxu0 %v381
    %463 = vmatprep.subr.bf16.mxu0 0
    %464 = vmatpush1.bf16.msra.mxu0 %v380
    %465 = vmatprep.subr.bf16.mxu0 0
    %466 = vmatpush1.bf16.msra.mxu0 %v379
    %467 = vmatprep.subr.bf16.mxu0 0
    %468 = vmatpush1.bf16.msra.mxu0 %v378
    %469 = vmatprep.subr.bf16.mxu0 0
    %470 = vmatpush1.bf16.msra.mxu0 %v377
    %471 = vmatprep.subr.bf16.mxu0 0
    %472 = vmatpush1.bf16.msra.mxu0 %v376
    %473 = vmatprep.subr.bf16.mxu0 0
    %474 = vmatpush2.bf16.msra.mxu0 0
    %475 = vmatprep.subr.bf16.mxu0 0
    %476 = vmatpush2.bf16.msra.mxu0 0
    %477 = vmatprep.subr.bf16.mxu0 0
    %478 = vmatpush2.bf16.msra.mxu0 0
    %479 = vmatprep.subr.bf16.mxu0 0
    %480 = vmatpush2.bf16.msra.mxu0 0
    %481 = vmatprep.subr.bf16.mxu0 0
    %482 = vmatpush2.bf16.msra.mxu0 0
    %483 = vmatprep.subr.bf16.mxu0 0
    %484 = vmatpush2.bf16.msra.mxu0 0
    %485 = vmatprep.subr.bf16.mxu0 0
    %486 = vmatpush2.bf16.msra.mxu0 0
    %487 = vmatprep.subr.bf16.mxu0 0
    %488 = vmatpush2.bf16.msra.mxu0 0
    %489 = vmatprep.mubr.bf16.mxu0 0
    %490 = vmatmul.mubr.bf16.gmra.mxu0 %v254
    %v491 = vpop.f32.mrf.mxu0
    %v492 = vadd.f32 %v443, %v491
    %v493 = vpop.f32.mrf.mxu0
    %v494 = vpop.f32.mrf.mxu0
    %v495 = vadd.f32 %v446, %v494
    %v496 = vpop.f32.mrf.mxu0
    %497 = vmatprep.mubr.bf16.mxu0 0
    %498 = vmatmul.mubr.bf16.gmra.mxu0 %v257
    %v499 = vpop.f32.mrf.mxu0
    %v500 = vadd.f32 %v451, %v499
    %v501 = vpop.f32.mrf.mxu0
    %v502 = vpop.f32.mrf.mxu0
    %v503 = vadd.f32 %v454, %v502
    %v504 = vpop.f32.mrf.mxu0
    %505 = vdwg.mxu0
    %v506 = vadd.f32 %v492, %v495
    %v507 = vadd.f32 %v506, %v500
    %v508 = vadd.f32 %v507, %v503
    %v509 = vrot.slane %v508, 4
    %v510 = vadd.f32 %v508, %v509
    %v511 = vrot.slane %v510, 2
    %v512 = vadd.f32 %v510, %v511
    %v513 = vrot.slane %v512, 1
    %v514 = vadd.f32 %v512, %v513
    %v515 = vmul.f32 %v492, %v492
    %v516 = vmul.f32 %v495, %v495
    %v517 = vmul.f32 %v500, %v500
    %v518 = vmul.f32 %v503, %v503
    %v519 = vadd.f32 %v515, %v516
    %v520 = vadd.f32 %v519, %v517
    %v521 = vadd.f32 %v520, %v518
    %v522 = vrot.slane %v521, 4
    %v523 = vadd.f32 %v521, %v522
    %v524 = vrot.slane %v523, 2
    %v525 = vadd.f32 %v523, %v524
    %v526 = vrot.slane %v525, 1
    %v527 = vadd.f32 %v525, %v526
    %vm528 = vcmask 1040384
    %v529 = vsel %vm528, %v514, %v527
    %530 = vmatprep.subr.mxu0 0.0
    %531 = vmatpush1.msra.mxu0 %v67
    %532 = vmatprep.subr.mxu0 0.0
    %533 = vmatpush1.msra.mxu0 %v66
    %534 = vmatprep.subr.mxu0 0.0
    %535 = vmatpush1.msra.mxu0 %v65
    %536 = vmatprep.subr.mxu0 0.0
    %537 = vmatpush1.msra.mxu0 %v64
    %538 = vmatprep.subr.mxu0 0.0
    %539 = vmatpush1.msra.mxu0 %v63
    %540 = vmatprep.subr.mxu0 0.0
    %541 = vmatpush1.msra.mxu0 %v62
    %542 = vmatprep.subr.mxu0 0.0
    %543 = vmatpush1.msra.mxu0 %v61
    %544 = vmatprep.subr.mxu0 0.0
    %545 = vmatpush1.msra.mxu0 %v60
    %546 = vmatprep.subr.mxu0 0.0
    %547 = vmatpush1.msra.mxu0 %v59
    %548 = vmatprep.subr.mxu0 0.0
    %549 = vmatpush1.msra.mxu0 %v58
    %550 = vmatprep.subr.mxu0 0.0
    %551 = vmatpush1.msra.mxu0 %v57
    %552 = vmatprep.subr.mxu0 0.0
    %553 = vmatpush1.msra.mxu0 %v56
    %554 = vmatprep.subr.mxu0 0.0
    %555 = vmatpush1.msra.mxu0 %v55
    %556 = vmatprep.subr.mxu0 0.0
    %557 = vmatpush1.msra.mxu0 %v54
    %558 = vmatprep.subr.mxu0 0.0
    %559 = vmatpush1.msra.mxu0 %v53
    %560 = vmatprep.subr.mxu0 0.0
    %561 = vmatpush1.msra.mxu0 %v52
    %562 = vmatprep.subr.mxu0 0.0
    %563 = vmatpush2.msra.mxu0 0.0
    %564 = vmatprep.subr.mxu0 0.0
    %565 = vmatpush2.msra.mxu0 0.0
    %566 = vmatprep.subr.mxu0 0.0
    %567 = vmatpush2.msra.mxu0 0.0
    %568 = vmatprep.subr.mxu0 0.0
    %569 = vmatpush2.msra.mxu0 0.0
    %570 = vmatprep.subr.mxu0 0.0
    %571 = vmatpush2.msra.mxu0 0.0
    %572 = vmatprep.subr.mxu0 0.0
    %573 = vmatpush2.msra.mxu0 0.0
    %574 = vmatprep.subr.mxu0 0.0
    %575 = vmatpush2.msra.mxu0 0.0
    %576 = vmatprep.subr.mxu0 0.0
    %577 = vmatpush2.msra.mxu0 0.0
    %578 = vmatprep.subr.mxu0 0.0
    %579 = vmatpush2.msra.mxu0 0.0
    %580 = vmatprep.subr.mxu0 0.0
    %581 = vmatpush2.msra.mxu0 0.0
    %582 = vmatprep.subr.mxu0 0.0
    %583 = vmatpush2.msra.mxu0 0.0
    %584 = vmatprep.subr.mxu0 0.0
    %585 = vmatpush2.msra.mxu0 0.0
    %586 = vmatprep.subr.mxu0 0.0
    %587 = vmatpush2.msra.mxu0 0.0
    %588 = vmatprep.subr.mxu0 0.0
    %589 = vmatpush2.msra.mxu0 0.0
    %590 = vmatprep.subr.mxu0 0.0
    %591 = vmatpush2.msra.mxu0 0.0
    %592 = vmatprep.subr.mxu0 0.0
    %593 = vmatpush2.msra.mxu0 0.0
    %594 = vmatprep.mubr.f32.mxu0 0.0
    %595 = vmatmul.mubr.f32.gmra.mxu0 %v529
    %v596 = vpop.f32.mrf.mxu0
    %v597 = vadd.f32 0.0, %v596
    %v598 = vpop.f32.mrf.mxu0
    %599 = vdwg.mxu0
    %v600 = vmul.f32 %v597, 0.001953125
    %v601 = vmul.f32 %v600, %v600
    %v603 = vrot.slane %v601, 7
    %v605 = vsub.f32 %v600, %v603
    %v606 = vld [vmem:[%s5] sm:$0x1]
    %v607 = vadd.f32 %v605, 1e-05
    %v608 = vrsqrt.pop %v607
    %v611 = vunpack.c.l.s4 1966171168
    %v612 = vunpack.c.0.s8 %v611
    %v613 = vlaneseq
    %v614 = vshrl.u32 %v613, 7
    %v615 = vsub.s32 %v612, %v614
    %v616 = vrot.slane %v608, %v615
    %v617 = vcombine.high %v616, %v616
    %v619 = vunpack.c.l.s4 1966171168
    %v620 = vunpack.c.0.s8 %v619
    %v621 = vlaneseq
    %v622 = vshrl.u32 %v621, 7
    %v623 = vsub.s32 %v620, %v622
    %v624 = vrot.slane %v617, %v623
    %v626 = vmul.f32 %v606, %v624
    %v627 = vld [vmem:[%s6] sm:$0x1]
    %v628 = vmul.f32 %v600, %v626
    %v629 = vsub.f32 %v627, %v628
    %v631 = vlaneseq
    %v632 = vshrl.u32 %v631, 7
    %v633 = vsub.s32 0, %v632
    %v634 = vrot.slane %v629, %v633
    %v636 = vsel %vm528, %v626, %v634
    %vm637 = vcmask 64512
    %v639 = vsel %vm637, %v636, 0
    %641 = vmatprep.subr.mxu0 0.0
    %642 = vmatpush1.msra.mxu0 0.0
    %643 = vmatprep.subr.mxu0 0.0
    %644 = vmatpush1.msra.mxu0 0.0
    %645 = vmatprep.subr.mxu0 0.0
    %646 = vmatpush1.msra.mxu0 0.0
    %647 = vmatprep.subr.mxu0 0.0
    %648 = vmatpush1.msra.mxu0 0.0
    %649 = vmatprep.subr.mxu0 0.0
    %650 = vmatpush1.msra.mxu0 0.0
    %651 = vmatprep.subr.mxu0 0.0
    %652 = vmatpush1.msra.mxu0 0.0
    %653 = vmatprep.subr.mxu0 0.0
    %654 = vmatpush1.msra.mxu0 0.0
    %655 = vmatprep.subr.mxu0 0.0
    %656 = vmatpush1.msra.mxu0 0.0
    %657 = vmatprep.subr.mxu0 0.0
    %658 = vmatpush1.msra.mxu0 0.0
    %659 = vmatprep.subr.mxu0 0.0
    %660 = vmatpush1.msra.mxu0 0.0
    %661 = vmatprep.subr.mxu0 0.0
    %662 = vmatpush1.msra.mxu0 0.0
    %663 = vmatprep.subr.mxu0 0.0
    %664 = vmatpush1.msra.mxu0 0.0
    %665 = vmatprep.subr.mxu0 0.0
    %666 = vmatpush1.msra.mxu0 0.0
    %667 = vmatprep.subr.mxu0 0.0
    %668 = vmatpush1.msra.mxu0 0.0
    %669 = vmatprep.subr.mxu0 0.0
    %670 = vmatpush1.msra.mxu0 0.0
    %671 = vmatprep.subr.mxu0 0.0
    %672 = vmatpush1.msra.mxu0 %v68
    %673 = vmatprep.subr.mxu0 0.0
    %674 = vmatpush2.msra.mxu0 0.0
    %675 = vmatprep.subr.mxu0 0.0
    %676 = vmatpush2.msra.mxu0 0.0
    %677 = vmatprep.subr.mxu0 0.0
    %678 = vmatpush2.msra.mxu0 0.0
    %679 = vmatprep.subr.mxu0 0.0
    %680 = vmatpush2.msra.mxu0 0.0
    %681 = vmatprep.subr.mxu0 0.0
    %682 = vmatpush2.msra.mxu0 0.0
    %683 = vmatprep.subr.mxu0 0.0
    %684 = vmatpush2.msra.mxu0 0.0
    %685 = vmatprep.subr.mxu0 0.0
    %686 = vmatpush2.msra.mxu0 0.0
    %687 = vmatprep.subr.mxu0 0.0
    %688 = vmatpush2.msra.mxu0 0.0
    %689 = vmatprep.subr.mxu0 0.0
    %690 = vmatpush2.msra.mxu0 0.0
    %691 = vmatprep.subr.mxu0 0.0
    %692 = vmatpush2.msra.mxu0 0.0
    %693 = vmatprep.subr.mxu0 0.0
    %694 = vmatpush2.msra.mxu0 0.0
    %695 = vmatprep.subr.mxu0 0.0
    %696 = vmatpush2.msra.mxu0 0.0
    %697 = vmatprep.subr.mxu0 0.0
    %698 = vmatpush2.msra.mxu0 0.0
    %699 = vmatprep.subr.mxu0 0.0
    %700 = vmatpush2.msra.mxu0 0.0
    %701 = vmatprep.subr.mxu0 0.0
    %702 = vmatpush2.msra.mxu0 0.0
    %703 = vmatprep.subr.mxu0 0.0
    %704 = vmatpush2.msra.mxu0 0.0
    %705 = vmatprep.mubr.f32.mxu0 0.0
    %706 = vmatmul.mubr.f32.gmra.mxu0 %v639
    %v707 = vpop.f32.mrf.mxu0
    %v708 = vadd.f32 0.0, %v707
    %v709 = vpop.f32.mrf.mxu0
    %710 = vdwg.mxu0
    %v711 = vlaneseq
    %v712 = vshrl.u32 %v711, 7
    %v713 = vsub.s32 0, %v712
    %v714 = vrot.slane %v708, %v713
    %v715 = vmul.f32 %v492, %v714
    %v716 = vmul.f32 %v495, %v714
    %v717 = vmul.f32 %v500, %v714
    %v718 = vmul.f32 %v503, %v714
    %v719 = vlaneseq
    %v720 = vshrl.u32 %v719, 7
    %v721 = vsub.s32 1, %v720
    %v722 = vrot.slane %v708, %v721
    %v723 = vadd.f32 %v715, %v722
    %v724 = vadd.f32 %v716, %v722
    %v725 = vadd.f32 %v717, %v722
    %v726 = vadd.f32 %v718, %v722
    %v727 = vmax.f32 %v723, 0.0
    %v728 = vmax.f32 %v724, 0.0
    %v729 = vmax.f32 %v725, 0.0
    %v730 = vmax.f32 %v726, 0.0
    %v731 = vpack.c.bf16 %v728, %v727
    %v732 = vpack.c.bf16 %v730, %v729
    %v735 = vunpack.c.l.b16 %v731
    %v736 = vunpack.c.h.b16 %v731
    %v737 = vunpack.c.l.b16 %v732
    %v738 = vunpack.c.h.b16 %v732
    %v739 = vpack.c.b16 %v735, %v735
    %v740 = vpack.c.b16 %v736, %v736
    %v741 = vpack.c.b16 %v737, %v737
    %v742 = vpack.c.b16 %v738, %v738
    %v744 = vshrl.u32 %v739, 16
    %v746 = vrot.slane %v744, 7
    %v747 = vshll.u32 %v739, 16
    %v749 = vor.u32 %v746, %v747
    %v750 = vrot.slane %v746, 4
    %v752 = vshrl.u32 %v740, 16
    %v754 = vrot.slane %v752, 7
    %v755 = vshll.u32 %v740, 16
    %v757 = vor.u32 %v754, %v755
    %v758 = vsel %vm86, %v750, %v757
    %v760 = vshrl.u32 %v741, 16
    %v762 = vrot.slane %v760, 7
    %v763 = vshll.u32 %v741, 16
    %v765 = vor.u32 %v762, %v763
    %v766 = vrot.slane %v762, 4
    %v768 = vshrl.u32 %v742, 16
    %v770 = vrot.slane %v768, 7
    %v771 = vshll.u32 %v742, 16
    %v773 = vor.u32 %v770, %v771
    %v774 = vsel %vm86, %v766, %v773
    %v779 = vld [vmem:[#allocation2] sm:$0xf]
    %v780 = vsel %vm125, %v749, %v779
    %781 = vst [vmem:[#allocation2] sm:$0xf] %v780
    %782 = vst [vmem:[#allocation2 + $0xc] sm:$0xf] %v758
    %v783 = vld [vmem:[#allocation2 + $0x18] sm:$0xf]
    %v784 = vsel %vm125, %v765, %v783
    %785 = vst [vmem:[#allocation2 + $0x18] sm:$0xf] %v784
    %786 = vst [vmem:[#allocation2 + $0x24] sm:$0xf] %v774
    %791 = vst [vmem:[#allocation2 + $0x4] sm:$0xf] %v739
    %792 = vst [vmem:[#allocation2 + $0x10] sm:$0xf] %v740
    %793 = vst [vmem:[#allocation2 + $0x1c] sm:$0xf] %v741
    %794 = vst [vmem:[#allocation2 + $0x28] sm:$0xf] %v742
    %v795 = vrot.slane %v744, 4
    %v796 = vrot.slane %v747, 5
    %v797 = vor.u32 %v795, %v796
    %v798 = vrot.slane %v797, 4
    %v799 = vrot.slane %v755, 5
    %v800 = vsel %vm144, %v798, %v799
    %v801 = vrot.slane %v752, 4
    %v802 = vor.u32 %v801, %v799
    %v803 = vrot.slane %v802, 4
    %v804 = vrot.slane %v760, 4
    %v805 = vrot.slane %v763, 5
    %v806 = vor.u32 %v804, %v805
    %v807 = vrot.slane %v806, 4
    %v808 = vrot.slane %v771, 5
    %v809 = vsel %vm144, %v807, %v808
    %v810 = vrot.slane %v768, 4
    %v811 = vor.u32 %v810, %v808
    %v812 = vrot.slane %v811, 4
    %817 = vst [vmem:[#allocation2 + $0x8] sm:$0xf] %v800
    %v818 = vld [vmem:[#allocation2 + $0x14] sm:$0xf]
    %v819 = vsel %vm168, %v803, %v818
    %820 = vst [vmem:[#allocation2 + $0x14] sm:$0xf] %v819
    %821 = vst [vmem:[#allocation2 + $0x20] sm:$0xf] %v809
    %v822 = vld [vmem:[#allocation2 + $0x2c] sm:$0xf]
    %v823 = vsel %vm168, %v812, %v822
    %824 = vst [vmem:[#allocation2 + $0x2c] sm:$0xf] %v823
    %v825 = vld [vmem:[#allocation2] sm:$0xff]
    %v826 = vld [vmem:[#allocation2 + $0x8] sm:$0xf]
    %v827 = vld [vmem:[#allocation2 + $0xc] sm:$0xff]
    %v828 = vld [vmem:[#allocation2 + $0x14] sm:$0xf]
    %v829 = vld [vmem:[#allocation2 + $0x18] sm:$0xff]
    %v830 = vld [vmem:[#allocation2 + $0x20] sm:$0xf]
    %v831 = vld [vmem:[#allocation2 + $0x24] sm:$0xff]
    %v832 = vld [vmem:[#allocation2 + $0x2c] sm:$0xf]
    %v833 = vld [vmem:[%s2] sm:$0xf]
    %v834 = vld [vmem:[%s2 + $0x4] sm:$0xf]
    %v835 = vld [vmem:[%s2 + $0x8] sm:$0xf]
    %v836 = vld [vmem:[%s2 + $0xc] sm:$0xf]
    %v837 = vld [vmem:[%s2 + $0x10] sm:$0xf]
    %v838 = vld [vmem:[%s2 + $0x14] sm:$0xf]
    %v839 = vld [vmem:[%s2 + $0x18] sm:$0xf]
    %v840 = vld [vmem:[%s2 + $0x1c] sm:$0xf]
    %v841 = vld [vmem:[%s2 + $0x20] sm:$0xf]
    %v842 = vld [vmem:[%s2 + $0x24] sm:$0xf]
    %v843 = vld [vmem:[%s2 + $0x28] sm:$0xf]
    %v844 = vld [vmem:[%s2 + $0x2c] sm:$0xf]
    %v845 = vld [vmem:[%s2 + $0x30] sm:$0xf]
    %v846 = vld [vmem:[%s2 + $0x34] sm:$0xf]
    %v847 = vld [vmem:[%s2 + $0x38] sm:$0xf]
    %v848 = vld [vmem:[%s2 + $0x3c] sm:$0xf]
    %v849 = vld [vmem:[%s2 + $0x40] sm:$0xf]
    %v850 = vld [vmem:[%s2 + $0x44] sm:$0xf]
    %v851 = vld [vmem:[%s2 + $0x48] sm:$0xf]
    %v852 = vld [vmem:[%s2 + $0x4c] sm:$0xf]
    %v853 = vld [vmem:[%s2 + $0x50] sm:$0xf]
    %v854 = vld [vmem:[%s2 + $0x54] sm:$0xf]
    %v855 = vld [vmem:[%s2 + $0x58] sm:$0xf]
    %v856 = vld [vmem:[%s2 + $0x5c] sm:$0xf]
    %v857 = vld [vmem:[%s2 + $0x60] sm:$0xf]
    %v858 = vld [vmem:[%s2 + $0x64] sm:$0xf]
    %v859 = vld [vmem:[%s2 + $0x68] sm:$0xf]
    %v860 = vld [vmem:[%s2 + $0x6c] sm:$0xf]
    %v861 = vld [vmem:[%s2 + $0x70] sm:$0xf]
    %v862 = vld [vmem:[%s2 + $0x74] sm:$0xf]
    %v863 = vld [vmem:[%s2 + $0x78] sm:$0xf]
    %v864 = vld [vmem:[%s2 + $0x7c] sm:$0xf]
    %v865 = vld [vmem:[%s2 + $0x80] sm:$0xf]
    %v866 = vld [vmem:[%s2 + $0x84] sm:$0xf]
    %v867 = vld [vmem:[%s2 + $0x88] sm:$0xf]
    %v868 = vld [vmem:[%s2 + $0x8c] sm:$0xf]
    %v869 = vld [vmem:[%s2 + $0x90] sm:$0xf]
    %v870 = vld [vmem:[%s2 + $0x94] sm:$0xf]
    %v871 = vld [vmem:[%s2 + $0x98] sm:$0xf]
    %v872 = vld [vmem:[%s2 + $0x9c] sm:$0xf]
    %v873 = vld [vmem:[%s2 + $0xa0] sm:$0xf]
    %v874 = vld [vmem:[%s2 + $0xa4] sm:$0xf]
    %v875 = vld [vmem:[%s2 + $0xa8] sm:$0xf]
    %v876 = vld [vmem:[%s2 + $0xac] sm:$0xf]
    %v877 = vld [vmem:[%s2 + $0xb0] sm:$0xf]
    %v878 = vld [vmem:[%s2 + $0xb4] sm:$0xf]
    %v879 = vld [vmem:[%s2 + $0xb8] sm:$0xf]
    %v880 = vld [vmem:[%s2 + $0xbc] sm:$0xf]
    %v889 = vunpack.c.l.b16 %v825
    %v890 = vunpack.c.h.b16 %v825
    %v891 = vunpack.c.l.b16 %v826
    %v892 = vunpack.c.l.b16 %v827
    %v893 = vunpack.c.h.b16 %v827
    %v894 = vunpack.c.l.b16 %v828
    %v895 = vunpack.c.l.b16 %v829
    %v896 = vunpack.c.h.b16 %v829
    %v897 = vunpack.c.l.b16 %v830
    %v898 = vunpack.c.l.b16 %v831
    %v899 = vunpack.c.h.b16 %v831
    %v900 = vunpack.c.l.b16 %v832
    %v901 = vpack.c.b16 %v892, %v889
    %v902 = vpack.c.b16 %v893, %v890
    %v903 = vpack.c.b16 %v894, %v891
    %v904 = vpack.c.b16 %v898, %v895
    %v905 = vpack.c.b16 %v899, %v896
    %v906 = vpack.c.b16 %v900, %v897
    %v961 = vunpack.c.l.b16 %v833
    %v962 = vunpack.c.l.b16 %v834
    %v963 = vunpack.c.l.b16 %v835
    %v964 = vunpack.c.l.b16 %v836
    %v965 = vunpack.c.l.b16 %v837
    %v966 = vunpack.c.l.b16 %v838
    %v967 = vunpack.c.l.b16 %v839
    %v968 = vunpack.c.l.b16 %v840
    %v969 = vunpack.c.l.b16 %v841
    %v970 = vunpack.c.l.b16 %v842
    %v971 = vunpack.c.l.b16 %v843
    %v972 = vunpack.c.l.b16 %v844
    %v973 = vunpack.c.l.b16 %v845
    %v974 = vunpack.c.l.b16 %v846
    %v975 = vunpack.c.l.b16 %v847
    %v976 = vunpack.c.l.b16 %v848
    %v977 = vunpack.c.l.b16 %v849
    %v978 = vunpack.c.l.b16 %v850
    %v979 = vunpack.c.l.b16 %v851
    %v980 = vunpack.c.l.b16 %v852
    %v981 = vunpack.c.l.b16 %v853
    %v982 = vunpack.c.l.b16 %v854
    %v983 = vunpack.c.l.b16 %v855
    %v984 = vunpack.c.l.b16 %v856
    %v985 = vunpack.c.l.b16 %v857
    %v986 = vunpack.c.l.b16 %v858
    %v987 = vunpack.c.l.b16 %v859
    %v988 = vunpack.c.l.b16 %v860
    %v989 = vunpack.c.l.b16 %v861
    %v990 = vunpack.c.l.b16 %v862
    %v991 = vunpack.c.l.b16 %v863
    %v992 = vunpack.c.l.b16 %v864
    %v993 = vunpack.c.l.b16 %v865
    %v994 = vunpack.c.l.b16 %v866
    %v995 = vunpack.c.l.b16 %v867
    %v996 = vunpack.c.l.b16 %v868
    %v997 = vunpack.c.l.b16 %v869
    %v998 = vunpack.c.l.b16 %v870
    %v999 = vunpack.c.l.b16 %v871
    %v1000 = vunpack.c.l.b16 %v872
    %v1001 = vunpack.c.l.b16 %v873
    %v1002 = vunpack.c.l.b16 %v874
    %v1003 = vunpack.c.l.b16 %v875
    %v1004 = vunpack.c.l.b16 %v876
    %v1005 = vunpack.c.l.b16 %v877
    %v1006 = vunpack.c.l.b16 %v878
    %v1007 = vunpack.c.l.b16 %v879
    %v1008 = vunpack.c.l.b16 %v880
    %v1009 = vpack.c.b16 %v962, %v961
    %v1010 = vpack.c.b16 %v964, %v963
    %v1011 = vpack.c.b16 %v966, %v965
    %v1012 = vpack.c.b16 %v968, %v967
    %v1013 = vpack.c.b16 %v970, %v969
    %v1014 = vpack.c.b16 %v972, %v971
    %v1015 = vpack.c.b16 %v974, %v973
    %v1016 = vpack.c.b16 %v976, %v975
    %v1017 = vpack.c.b16 %v978, %v977
    %v1018 = vpack.c.b16 %v980, %v979
    %v1019 = vpack.c.b16 %v982, %v981
    %v1020 = vpack.c.b16 %v984, %v983
    %v1021 = vpack.c.b16 %v986, %v985
    %v1022 = vpack.c.b16 %v988, %v987
    %v1023 = vpack.c.b16 %v990, %v989
    %v1024 = vpack.c.b16 %v992, %v991
    %v1025 = vpack.c.b16 %v994, %v993
    %v1026 = vpack.c.b16 %v996, %v995
    %v1027 = vpack.c.b16 %v998, %v997
    %v1028 = vpack.c.b16 %v1000, %v999
    %v1029 = vpack.c.b16 %v1002, %v1001
    %v1030 = vpack.c.b16 %v1004, %v1003
    %v1031 = vpack.c.b16 %v1006, %v1005
    %v1032 = vpack.c.b16 %v1008, %v1007
    %1057 = vmatprep.subr.bf16.mxu0 0
    %1058 = vmatpush1.bf16.msra.mxu0 %v1016
    %1059 = vmatprep.subr.bf16.mxu0 0
    %1060 = vmatpush1.bf16.msra.mxu0 %v1015
    %1061 = vmatprep.subr.bf16.mxu0 0
    %1062 = vmatpush1.bf16.msra.mxu0 %v1014
    %1063 = vmatprep.subr.bf16.mxu0 0
    %1064 = vmatpush1.bf16.msra.mxu0 %v1013
    %1065 = vmatprep.subr.bf16.mxu0 0
    %1066 = vmatpush1.bf16.msra.mxu0 %v1012
    %1067 = vmatprep.subr.bf16.mxu0 0
    %1068 = vmatpush1.bf16.msra.mxu0 %v1011
    %1069 = vmatprep.subr.bf16.mxu0 0
    %1070 = vmatpush1.bf16.msra.mxu0 %v1010
    %1071 = vmatprep.subr.bf16.mxu0 0
    %1072 = vmatpush1.bf16.msra.mxu0 %v1009
    %1073 = vmatprep.subr.bf16.mxu0 0
    %1074 = vmatpush2.bf16.msra.mxu0 %v1024
    %1075 = vmatprep.subr.bf16.mxu0 0
    %1076 = vmatpush2.bf16.msra.mxu0 %v1023
    %1077 = vmatprep.subr.bf16.mxu0 0
    %1078 = vmatpush2.bf16.msra.mxu0 %v1022
    %1079 = vmatprep.subr.bf16.mxu0 0
    %1080 = vmatpush2.bf16.msra.mxu0 %v1021
    %1081 = vmatprep.subr.bf16.mxu0 0
    %1082 = vmatpush2.bf16.msra.mxu0 %v1020
    %1083 = vmatprep.subr.bf16.mxu0 0
    %1084 = vmatpush2.bf16.msra.mxu0 %v1019
    %1085 = vmatprep.subr.bf16.mxu0 0
    %1086 = vmatpush2.bf16.msra.mxu0 %v1018
    %1087 = vmatprep.subr.bf16.mxu0 0
    %1088 = vmatpush2.bf16.msra.mxu0 %v1017
    %1089 = vmatprep.mubr.bf16.mxu0 %v902
    %1090 = vmatmul.mubr.bf16.gmra.mxu0 %v901
    %v1091 = vpop.f32.mrf.mxu0
    %v1092 = vadd.f32 0.0, %v1091
    %v1093 = vpop.f32.mrf.mxu0
    %v1094 = vpop.f32.mrf.mxu0
    %v1095 = vadd.f32 0.0, %v1094
    %v1096 = vpop.f32.mrf.mxu0
    %1097 = vmatprep.mubr.bf16.mxu0 %v905
    %1098 = vmatmul.mubr.bf16.gmra.mxu0 %v904
    %v1099 = vpop.f32.mrf.mxu0
    %v1100 = vadd.f32 0.0, %v1099
    %v1101 = vpop.f32.mrf.mxu0
    %v1102 = vpop.f32.mrf.mxu0
    %v1103 = vadd.f32 0.0, %v1102
    %v1104 = vpop.f32.mrf.mxu0
    %1105 = vdwg.mxu0
    %1106 = vmatprep.subr.bf16.mxu0 0
    %1107 = vmatpush1.bf16.msra.mxu0 %v1032
    %1108 = vmatprep.subr.bf16.mxu0 0
    %1109 = vmatpush1.bf16.msra.mxu0 %v1031
    %1110 = vmatprep.subr.bf16.mxu0 0
    %1111 = vmatpush1.bf16.msra.mxu0 %v1030
    %1112 = vmatprep.subr.bf16.mxu0 0
    %1113 = vmatpush1.bf16.msra.mxu0 %v1029
    %1114 = vmatprep.subr.bf16.mxu0 0
    %1115 = vmatpush1.bf16.msra.mxu0 %v1028
    %1116 = vmatprep.subr.bf16.mxu0 0
    %1117 = vmatpush1.bf16.msra.mxu0 %v1027
    %1118 = vmatprep.subr.bf16.mxu0 0
    %1119 = vmatpush1.bf16.msra.mxu0 %v1026
    %1120 = vmatprep.subr.bf16.mxu0 0
    %1121 = vmatpush1.bf16.msra.mxu0 %v1025
    %1122 = vmatprep.subr.bf16.mxu0 0
    %1123 = vmatpush2.bf16.msra.mxu0 0
    %1124 = vmatprep.subr.bf16.mxu0 0
    %1125 = vmatpush2.bf16.msra.mxu0 0
    %1126 = vmatprep.subr.bf16.mxu0 0
    %1127 = vmatpush2.bf16.msra.mxu0 0
    %1128 = vmatprep.subr.bf16.mxu0 0
    %1129 = vmatpush2.bf16.msra.mxu0 0
    %1130 = vmatprep.subr.bf16.mxu0 0
    %1131 = vmatpush2.bf16.msra.mxu0 0
    %1132 = vmatprep.subr.bf16.mxu0 0
    %1133 = vmatpush2.bf16.msra.mxu0 0
    %1134 = vmatprep.subr.bf16.mxu0 0
    %1135 = vmatpush2.bf16.msra.mxu0 0
    %1136 = vmatprep.subr.bf16.mxu0 0
    %1137 = vmatpush2.bf16.msra.mxu0 0
    %1138 = vmatprep.mubr.bf16.mxu0 0
    %1139 = vmatmul.mubr.bf16.gmra.mxu0 %v903
    %v1140 = vpop.f32.mrf.mxu0
    %v1141 = vadd.f32 %v1092, %v1140
    %v1142 = vpop.f32.mrf.mxu0
    %v1143 = vpop.f32.mrf.mxu0
    %v1144 = vadd.f32 %v1095, %v1143
    %v1145 = vpop.f32.mrf.mxu0
    %1146 = vmatprep.mubr.bf16.mxu0 0
    %1147 = vmatmul.mubr.bf16.gmra.mxu0 %v906
    %v1148 = vpop.f32.mrf.mxu0
    %v1149 = vadd.f32 %v1100, %v1148
    %v1150 = vpop.f32.mrf.mxu0
    %v1151 = vpop.f32.mrf.mxu0
    %v1152 = vadd.f32 %v1103, %v1151
    %v1153 = vpop.f32.mrf.mxu0
    %1154 = vdwg.mxu0
    %v1155 = vadd.f32 %v1141, %v1144
    %v1156 = vadd.f32 %v1155, %v1149
    %v1157 = vadd.f32 %v1156, %v1152
    %v1158 = vrot.slane %v1157, 4
    %v1159 = vadd.f32 %v1157, %v1158
    %v1160 = vrot.slane %v1159, 2
    %v1161 = vadd.f32 %v1159, %v1160
    %v1162 = vrot.slane %v1161, 1
    %v1163 = vadd.f32 %v1161, %v1162
    %v1164 = vmul.f32 %v1141, %v1141
    %v1165 = vmul.f32 %v1144, %v1144
    %v1166 = vmul.f32 %v1149, %v1149
    %v1167 = vmul.f32 %v1152, %v1152
    %v1168 = vadd.f32 %v1164, %v1165
    %v1169 = vadd.f32 %v1168, %v1166
    %v1170 = vadd.f32 %v1169, %v1167
    %v1171 = vrot.slane %v1170, 4
    %v1172 = vadd.f32 %v1170, %v1171
    %v1173 = vrot.slane %v1172, 2
    %v1174 = vadd.f32 %v1172, %v1173
    %v1175 = vrot.slane %v1174, 1
    %v1176 = vadd.f32 %v1174, %v1175
    %v1177 = vsel %vm528, %v1163, %v1176
    %1178 = vmatprep.subr.mxu0 0.0
    %1179 = vmatpush1.msra.mxu0 %v67
    %1180 = vmatprep.subr.mxu0 0.0
    %1181 = vmatpush1.msra.mxu0 %v66
    %1182 = vmatprep.subr.mxu0 0.0
    %1183 = vmatpush1.msra.mxu0 %v65
    %1184 = vmatprep.subr.mxu0 0.0
    %1185 = vmatpush1.msra.mxu0 %v64
    %1186 = vmatprep.subr.mxu0 0.0
    %1187 = vmatpush1.msra.mxu0 %v63
    %1188 = vmatprep.subr.mxu0 0.0
    %1189 = vmatpush1.msra.mxu0 %v62
    %1190 = vmatprep.subr.mxu0 0.0
    %1191 = vmatpush1.msra.mxu0 %v61
    %1192 = vmatprep.subr.mxu0 0.0
    %1193 = vmatpush1.msra.mxu0 %v60
    %1194 = vmatprep.subr.mxu0 0.0
    %1195 = vmatpush1.msra.mxu0 %v59
    %1196 = vmatprep.subr.mxu0 0.0
    %1197 = vmatpush1.msra.mxu0 %v58
    %1198 = vmatprep.subr.mxu0 0.0
    %1199 = vmatpush1.msra.mxu0 %v57
    %1200 = vmatprep.subr.mxu0 0.0
    %1201 = vmatpush1.msra.mxu0 %v56
    %1202 = vmatprep.subr.mxu0 0.0
    %1203 = vmatpush1.msra.mxu0 %v55
    %1204 = vmatprep.subr.mxu0 0.0
    %1205 = vmatpush1.msra.mxu0 %v54
    %1206 = vmatprep.subr.mxu0 0.0
    %1207 = vmatpush1.msra.mxu0 %v53
    %1208 = vmatprep.subr.mxu0 0.0
    %1209 = vmatpush1.msra.mxu0 %v52
    %1210 = vmatprep.subr.mxu0 0.0
    %1211 = vmatpush2.msra.mxu0 0.0
    %1212 = vmatprep.subr.mxu0 0.0
    %1213 = vmatpush2.msra.mxu0 0.0
    %1214 = vmatprep.subr.mxu0 0.0
    %1215 = vmatpush2.msra.mxu0 0.0
    %1216 = vmatprep.subr.mxu0 0.0
    %1217 = vmatpush2.msra.mxu0 0.0
    %1218 = vmatprep.subr.mxu0 0.0
    %1219 = vmatpush2.msra.mxu0 0.0
    %1220 = vmatprep.subr.mxu0 0.0
    %1221 = vmatpush2.msra.mxu0 0.0
    %1222 = vmatprep.subr.mxu0 0.0
    %1223 = vmatpush2.msra.mxu0 0.0
    %1224 = vmatprep.subr.mxu0 0.0
    %1225 = vmatpush2.msra.mxu0 0.0
    %1226 = vmatprep.subr.mxu0 0.0
    %1227 = vmatpush2.msra.mxu0 0.0
    %1228 = vmatprep.subr.mxu0 0.0
    %1229 = vmatpush2.msra.mxu0 0.0
    %1230 = vmatprep.subr.mxu0 0.0
    %1231 = vmatpush2.msra.mxu0 0.0
    %1232 = vmatprep.subr.mxu0 0.0
    %1233 = vmatpush2.msra.mxu0 0.0
    %1234 = vmatprep.subr.mxu0 0.0
    %1235 = vmatpush2.msra.mxu0 0.0
    %1236 = vmatprep.subr.mxu0 0.0
    %1237 = vmatpush2.msra.mxu0 0.0
    %1238 = vmatprep.subr.mxu0 0.0
    %1239 = vmatpush2.msra.mxu0 0.0
    %1240 = vmatprep.subr.mxu0 0.0
    %1241 = vmatpush2.msra.mxu0 0.0
    %1242 = vmatprep.mubr.f32.mxu0 0.0
    %1243 = vmatmul.mubr.f32.gmra.mxu0 %v1177
    %v1244 = vpop.f32.mrf.mxu0
    %v1245 = vadd.f32 0.0, %v1244
    %v1246 = vpop.f32.mrf.mxu0
    %1247 = vdwg.mxu0
    %v1248 = vmul.f32 %v1245, 0.001953125
    %v1249 = vmul.f32 %v1248, %v1248
    %v1251 = vrot.slane %v1249, 7
    %v1253 = vsub.f32 %v1248, %v1251
    %v1254 = vld [vmem:[%s7] sm:$0x1]
    %v1255 = vadd.f32 %v1253, 1e-05
    %v1256 = vrsqrt.pop %v1255
    %v1259 = vunpack.c.l.s4 1966171168
    %v1260 = vunpack.c.0.s8 %v1259
    %v1261 = vlaneseq
    %v1262 = vshrl.u32 %v1261, 7
    %v1263 = vsub.s32 %v1260, %v1262
    %v1264 = vrot.slane %v1256, %v1263
    %v1265 = vcombine.high %v1264, %v1264
    %v1267 = vunpack.c.l.s4 1966171168
    %v1268 = vunpack.c.0.s8 %v1267
    %v1269 = vlaneseq
    %v1270 = vshrl.u32 %v1269, 7
    %v1271 = vsub.s32 %v1268, %v1270
    %v1272 = vrot.slane %v1265, %v1271
    %v1274 = vmul.f32 %v1254, %v1272
    %v1275 = vld [vmem:[%s8] sm:$0x1]
    %v1276 = vmul.f32 %v1248, %v1274
    %v1277 = vsub.f32 %v1275, %v1276
    %v1279 = vlaneseq
    %v1280 = vshrl.u32 %v1279, 7
    %v1281 = vsub.s32 0, %v1280
    %v1282 = vrot.slane %v1277, %v1281
    %v1284 = vsel %vm528, %v1274, %v1282
    %v1286 = vsel %vm637, %v1284, 0
    %1288 = vmatprep.subr.mxu0 0.0
    %1289 = vmatpush1.msra.mxu0 0.0
    %1290 = vmatprep.subr.mxu0 0.0
    %1291 = vmatpush1.msra.mxu0 0.0
    %1292 = vmatprep.subr.mxu0 0.0
    %1293 = vmatpush1.msra.mxu0 0.0
    %1294 = vmatprep.subr.mxu0 0.0
    %1295 = vmatpush1.msra.mxu0 0.0
    %1296 = vmatprep.subr.mxu0 0.0
    %1297 = vmatpush1.msra.mxu0 0.0
    %1298 = vmatprep.subr.mxu0 0.0
    %1299 = vmatpush1.msra.mxu0 0.0
    %1300 = vmatprep.subr.mxu0 0.0
    %1301 = vmatpush1.msra.mxu0 0.0
    %1302 = vmatprep.subr.mxu0 0.0
    %1303 = vmatpush1.msra.mxu0 0.0
    %1304 = vmatprep.subr.mxu0 0.0
    %1305 = vmatpush1.msra.mxu0 0.0
    %1306 = vmatprep.subr.mxu0 0.0
    %1307 = vmatpush1.msra.mxu0 0.0
    %1308 = vmatprep.subr.mxu0 0.0
    %1309 = vmatpush1.msra.mxu0 0.0
    %1310 = vmatprep.subr.mxu0 0.0
    %1311 = vmatpush1.msra.mxu0 0.0
    %1312 = vmatprep.subr.mxu0 0.0
    %1313 = vmatpush1.msra.mxu0 0.0
    %1314 = vmatprep.subr.mxu0 0.0
    %1315 = vmatpush1.msra.mxu0 0.0
    %1316 = vmatprep.subr.mxu0 0.0
    %1317 = vmatpush1.msra.mxu0 0.0
    %1318 = vmatprep.subr.mxu0 0.0
    %1319 = vmatpush1.msra.mxu0 %v68
    %1320 = vmatprep.subr.mxu0 0.0
    %1321 = vmatpush2.msra.mxu0 0.0
    %1322 = vmatprep.subr.mxu0 0.0
    %1323 = vmatpush2.msra.mxu0 0.0
    %1324 = vmatprep.subr.mxu0 0.0
    %1325 = vmatpush2.msra.mxu0 0.0
    %1326 = vmatprep.subr.mxu0 0.0
    %1327 = vmatpush2.msra.mxu0 0.0
    %1328 = vmatprep.subr.mxu0 0.0
    %1329 = vmatpush2.msra.mxu0 0.0
    %1330 = vmatprep.subr.mxu0 0.0
    %1331 = vmatpush2.msra.mxu0 0.0
    %1332 = vmatprep.subr.mxu0 0.0
    %1333 = vmatpush2.msra.mxu0 0.0
    %1334 = vmatprep.subr.mxu0 0.0
    %1335 = vmatpush2.msra.mxu0 0.0
    %1336 = vmatprep.subr.mxu0 0.0
    %1337 = vmatpush2.msra.mxu0 0.0
    %1338 = vmatprep.subr.mxu0 0.0
    %1339 = vmatpush2.msra.mxu0 0.0
    %1340 = vmatprep.subr.mxu0 0.0
    %1341 = vmatpush2.msra.mxu0 0.0
    %1342 = vmatprep.subr.mxu0 0.0
    %1343 = vmatpush2.msra.mxu0 0.0
    %1344 = vmatprep.subr.mxu0 0.0
    %1345 = vmatpush2.msra.mxu0 0.0
    %1346 = vmatprep.subr.mxu0 0.0
    %1347 = vmatpush2.msra.mxu0 0.0
    %1348 = vmatprep.subr.mxu0 0.0
    %1349 = vmatpush2.msra.mxu0 0.0
    %1350 = vmatprep.subr.mxu0 0.0
    %1351 = vmatpush2.msra.mxu0 0.0
    %1352 = vmatprep.mubr.f32.mxu0 0.0
    %1353 = vmatmul.mubr.f32.gmra.mxu0 %v1286
    %v1354 = vpop.f32.mrf.mxu0
    %v1355 = vadd.f32 0.0, %v1354
    %v1356 = vpop.f32.mrf.mxu0
    %1357 = vdwg.mxu0
    %v1358 = vlaneseq
    %v1359 = vshrl.u32 %v1358, 7
    %v1360 = vsub.s32 0, %v1359
    %v1361 = vrot.slane %v1355, %v1360
    %v1362 = vmul.f32 %v1141, %v1361
    %v1363 = vmul.f32 %v1144, %v1361
    %v1364 = vmul.f32 %v1149, %v1361
    %v1365 = vmul.f32 %v1152, %v1361
    %v1366 = vlaneseq
    %v1367 = vshrl.u32 %v1366, 7
    %v1368 = vsub.s32 1, %v1367
    %v1369 = vrot.slane %v1355, %v1368
    %v1370 = vadd.f32 %v1362, %v1369
    %v1371 = vadd.f32 %v1363, %v1369
    %v1372 = vadd.f32 %v1364, %v1369
    %v1373 = vadd.f32 %v1365, %v1369
    %v1374 = vld [vmem:[%s0] sm:$0xff]
    %v1375 = vld [vmem:[%s0 + $0x8] sm:$0xff]
    %v1376 = vld [vmem:[%s0 + $0x10] sm:$0xff]
    %v1377 = vld [vmem:[%s0 + $0x18] sm:$0xff]
    %v1378 = vadd.f32 %v1370, %v1374
    %v1379 = vadd.f32 %v1371, %v1375
    %v1380 = vadd.f32 %v1372, %v1376
    %v1381 = vadd.f32 %v1373, %v1377
    %v1382 = vmax.f32 %v1378, 0.0
    %v1383 = vmax.f32 %v1379, 0.0
    %v1384 = vmax.f32 %v1380, 0.0
    %v1385 = vmax.f32 %v1381, 0.0
    %1386 = vst [vmem:[#allocation3] sm:$0xff] %v1382
    %1387 = vst [vmem:[#allocation3 + $0x8] sm:$0xff] %v1383
    %1388 = vst [vmem:[#allocation3 + $0x10] sm:$0xff] %v1384
    %1389 = vst [vmem:[#allocation3 + $0x18] sm:$0xff] %v1385
    // Predicated region
    $region38: #{residual_block_rows.1} parent=1 // pred_check
      _
    $region39: #{residual_block_rows.1} parent=1 // pred_check_branch
      %1391 = sbr.rel (0) target = $region41
    $region40: #{residual_block_rows.1} parent=1 // pred_region
      %s1393 = ssub.s32 512, 512
      %1394 = vsyncadd [#allocation4], %s1393
      %s1395 = sshll.u32 [#allocation3], 4
      %s1396 = int_to_ptr.vmem [resolvable:$true] %s1395
      %1401 = dma.vmem_to_hbm [thread:$0]  %s1396, 512, %s9, [#allocation4], 128, 128, 8
    $region41: #{residual_block_rows.1} parent=1 // pred_fallthru
      _
    // Predicated region
    $region42: #{residual_block_rows.1} parent=1 // pred_check
      _
    $region43: #{residual_block_rows.1} parent=1 // pred_check_branch
      %1403 = sbr.rel (0) target = $region45
    $region44: #{residual_block_rows.1} parent=1 // pred_region
      %1404 = dma.done [#allocation4], 512
    $region45: #{residual_block_rows.1} parent=1 // pred_fallthru
      _
    %1405 = vsyncpa [#allocation4], 1

</llo_original>
